<compile_context>
chip_gen: v5e
topology: v5e:2x2
jax: 0.10.0
libtpu: 0.0.40
codegen_flags: <defaults>
</compile_context>

<pallas_src>
import jax
import jax.numpy as jnp
from jax.experimental import pallas as pl
from jax.experimental.pallas import tpu as pltpu


def vq_kernel(x_ref, e_ref, et_ref, e2_ref, q_ref, loss_ref):
    """One (batch, spatial-tile) step of VQ.

    x_ref   : (1, D, TN)     latent columns for this tile (lane-dense)
    e_ref   : (K_pad, D)     zero-padded codebook
    et_ref  : (D, K_pad)     codebook transposed
    e2_ref  : (K_pad, 1)     ||e_k||^2 (f32), +1e30 on padded rows
    q_ref   : (1, D, TN)     quantized output (lane-dense)
    loss_ref: (1, 1, 8, 128) this tile's SSE, broadcast over the block
    """
    x_t = x_ref[0]                             # (D, TN)  native dtype
    e = e_ref[...]                             # (Kp, D)
    e_t = et_ref[...]                          # (D, Kp)
    e2 = e2_ref[...]                           # (Kp, 1)  f32

    # scores[k, n] = e_k . x_n   (MXU, f32 accumulation)
    scores = jnp.dot(e, x_t, preferred_element_type=jnp.float32)       # (Kp, TN)

    # argmin_k ||x - e_k||^2 == argmin_k (||e_k||^2 - 2 e_k.x): the ||x||^2 term
    # is constant per column and dropped. Padded rows (dist = 1e30) never win.
    dist = e2 - 2.0 * scores                                            # (Kp, TN)

    # First-index argmin over the codebook axis (ties -> smallest k), built from
    # min + compare so everything stays vreg-shaped.
    kp = dist.shape[0]
    min_d = jnp.min(dist, axis=0, keepdims=True)                        # (1, TN)
    iota_k = jax.lax.broadcasted_iota(jnp.int32, dist.shape, 0)         # (Kp, TN)
    best_k = jnp.min(jnp.where(dist == min_d, iota_k, kp),
                     axis=0, keepdims=True)                             # (1, TN)
    one_hot_t = (iota_k == best_k).astype(e_t.dtype)                    # (Kp, TN)

    # Gather = codebook^T @ one_hot^T  -> already lane-dense, second MXU matmul.
    q_t = jnp.dot(e_t, one_hot_t, preferred_element_type=jnp.float32)   # (D, TN)
    q_ref[0] = q_t.astype(q_ref.dtype)

    # Per-tile sum of squared errors (f32), written to this tile's own output
    # block so both grid axes stay "parallel" (megacore-safe, no RMW output).
    diff = q_t - x_t.astype(jnp.float32)
    sse = jnp.sum(diff * diff)
    loss_ref[...] = jnp.broadcast_to(sse, loss_ref.shape).astype(jnp.float32)


def vector_quantizer_forward(latents_nchw, embedding, beta=0.25, tile_n=512):
    """Forward of VectorQuantizer.

    Returns (quantized_latents [B, D, H, W], vq_loss scalar).
    The straight-through output `latents + (q - latents).detach()` equals q
    numerically, so q is returned directly. In the forward pass
    commitment_loss == embedding_loss == MSE(q, x), so vq_loss = (1+beta)*MSE.
    """
    B, D, H, W = latents_nchw.shape
    K, D_e = embedding.shape
    assert D_e == D
    S = H * W
    assert S % 128 == 0, "H*W must be a multiple of 128 for lane-dense tiling"

    # Largest lane tile (multiple of 128) that divides S, capped at tile_n.
    tile_n = max(128, (min(tile_n, S) // 128) * 128)
    while S % tile_n:
        tile_n -= 128
    num_tiles = S // tile_n

    # NCHW is natively (B, D, H*W) — free reshape, no transpose / extra HBM pass.
    x = latents_nchw.reshape(B, D, S)

    # Codebook padded to a lane-dense K (multiple of 128); padded rows carry
    # ||e||^2 = +1e30 so they never win the argmin. ||e||^2 computed once here.
    k_pad = ((K + 127) // 128) * 128
    e_pad = jnp.zeros((k_pad, D), dtype=embedding.dtype).at[:K].set(embedding)
    e2 = jnp.sum(embedding.astype(jnp.float32) ** 2, axis=1)
    e2_pad = jnp.full((k_pad,), 1e30, dtype=jnp.float32).at[:K].set(e2)
    e2_pad = e2_pad.reshape(k_pad, 1)
    e_t_pad = e_pad.T

    q, partial_sse = pl.pallas_call(
        vq_kernel,
        out_shape=(
            jax.ShapeDtypeStruct((B, D, S), latents_nchw.dtype),
            jax.ShapeDtypeStruct((B, num_tiles, 8, 128), jnp.float32),
        ),
        grid_spec=pltpu.PrefetchScalarGridSpec(
            num_scalar_prefetch=0,
            grid=(B, num_tiles),
            in_specs=[
                pl.BlockSpec((1, D, tile_n), lambda b, i: (b, 0, i)),  # latents
                pl.BlockSpec((k_pad, D), lambda b, i: (0, 0)),         # codebook
                pl.BlockSpec((D, k_pad), lambda b, i: (0, 0)),         # codebook^T
                pl.BlockSpec((k_pad, 1), lambda b, i: (0, 0)),         # ||e||^2
            ],
            out_specs=(
                pl.BlockSpec((1, D, tile_n), lambda b, i: (b, 0, i)),    # quantized
                pl.BlockSpec((1, 1, 8, 128), lambda b, i: (b, i, 0, 0)),  # tile SSE
            ),
        ),
        compiler_params=pltpu.CompilerParams(
            dimension_semantics=("parallel", "parallel")),   # megacore on v7x
    )(x, e_pad, e_t_pad, e2_pad)

    # Each tile's block is filled with its SSE; take one element per tile.
    sse = jnp.sum(partial_sse[:, :, 0, 0])
    mse = sse / jnp.float32(B * S * D)
    vq_loss = (1.0 + beta) * mse

    return q.reshape(B, D, H, W), vq_loss


def _reference_forward(latents_nchw, embedding, beta=0.25):
    """Pure-JAX reference mirroring the PyTorch module."""
    B, D, H, W = latents_nchw.shape
    x = jnp.transpose(latents_nchw, (0, 2, 3, 1)).reshape(-1, D)
    dist = (jnp.sum(x ** 2, axis=1, keepdims=True)
            + jnp.sum(embedding ** 2, axis=1)
            - 2.0 * x @ embedding.T)
    inds = jnp.argmin(dist, axis=1)
    q = embedding[inds]
    mse = jnp.mean((q - x) ** 2)
    vq_loss = beta * mse + mse
    q = jnp.transpose(q.reshape(B, H, W, D), (0, 3, 1, 2))
    return q, vq_loss


if __name__ == "__main__":
    # Module hyper-params (deterministic, in-script init).
    K = 16      # num_embeddings
    D = 32      # embedding_dim
    beta = 0.25
    B, H, W = 2, 32, 32   # S = H*W = 1024 -> grid (2, 2) at tile_n=512

    key = jax.random.PRNGKey(0)
    k_lat, k_emb = jax.random.split(key)

    latents = jax.random.normal(k_lat, (B, D, H, W), dtype=jnp.float32)
    # nn.Embedding(K, D).weight.data.uniform_(-1/K, 1/K)
    embedding = jax.random.uniform(
        k_emb, (K, D), dtype=jnp.float32, minval=-1.0 / K, maxval=1.0 / K)

    q, vq_loss = vector_quantizer_forward(latents, embedding, beta=beta)
    q = jax.block_until_ready(q)
    vq_loss = jax.block_until_ready(vq_loss)

    # Lightweight correctness check against a pure-JAX reference.
    q_ref, loss_ref = _reference_forward(latents, embedding, beta=beta)
    assert q.shape == (B, D, H, W)
    assert jnp.allclose(q, q_ref, atol=1e-5, rtol=1e-5)
    assert jnp.allclose(vq_loss, loss_ref, atol=1e-5, rtol=1e-5)

    # TODO(synk): straight-through estimator (.detach()) only affects backward;
    # forward value of q is exact, gradients are not implemented here.
    print("KERNEL_OK")
</pallas_src>

<mosaic_0001>
module attributes {stable_mosaic.version = 11 : i64} {
  func.func @vq_kernel(%arg0: i32, %arg1: i32, %arg2: memref<1x32x512xf32, #tpu.memory_space<vmem>>, %arg3: memref<128x32xf32, #tpu.memory_space<vmem>>, %arg4: memref<32x128xf32, #tpu.memory_space<vmem>>, %arg5: memref<128x1xf32, #tpu.memory_space<vmem>>, %arg6: memref<1x32x512xf32, #tpu.memory_space<vmem>>, %arg7: memref<1x1x8x128xf32, #tpu.memory_space<vmem>>) attributes {dimension_semantics = [#tpu.dimension_semantics<parallel>, #tpu.dimension_semantics<parallel>], iteration_bounds = array<i64: 2, 2>, scalar_prefetch = 0 : i64, scratch_operands = 0 : i64, tpu.core_type = #tpu.core_type<tc>, window_params = [{transform_indices = @transform_0, window_bounds = array<i64: 1, 32, 512>}, {pipeline_mode = #tpu.pipeline_mode<synchronous>, transform_indices = @transform_1, window_bounds = array<i64: 128, 32>}, {pipeline_mode = #tpu.pipeline_mode<synchronous>, transform_indices = @transform_2, window_bounds = array<i64: 32, 128>}, {pipeline_mode = #tpu.pipeline_mode<synchronous>, transform_indices = @transform_3, window_bounds = array<i64: 128, 1>}, {transform_indices = @transform_4, window_bounds = array<i64: 1, 32, 512>}, {transform_indices = @transform_5, window_bounds = array<i64: 1, 1, 8, 128>}]} {
    %c0 = arith.constant 0 : index
    %c0_0 = arith.constant 0 : index
    %c0_1 = arith.constant 0 : index
    %0 = vector.load %arg2[%c0, %c0_0, %c0_1] : memref<1x32x512xf32, #tpu.memory_space<vmem>>, vector<1x32x512xf32>
    %1 = vector.shape_cast %0 : vector<1x32x512xf32> to vector<32x512xf32>
    %c0_2 = arith.constant 0 : index
    %c0_3 = arith.constant 0 : index
    %2 = vector.load %arg3[%c0_2, %c0_3] : memref<128x32xf32, #tpu.memory_space<vmem>>, vector<128x32xf32>
    %c0_4 = arith.constant 0 : index
    %c0_5 = arith.constant 0 : index
    %3 = vector.load %arg4[%c0_4, %c0_5] : memref<32x128xf32, #tpu.memory_space<vmem>>, vector<32x128xf32>
    %c0_6 = arith.constant 0 : index
    %c0_7 = arith.constant 0 : index
    %4 = vector.load %arg5[%c0_6, %c0_7] : memref<128x1xf32, #tpu.memory_space<vmem>>, vector<128x1xf32>
    %cst = arith.constant dense<0.000000e+00> : vector<128x512xf32>
    %5 = tpu.matmul %2, %1, %cst {dimension_numbers = #tpu.dot_dimension_numbers<[1], [0], [0], [1], [0, 0, 1, 1], [], []>} : vector<128x32xf32>, vector<32x512xf32>, vector<128x512xf32> -> vector<128x512xf32>
    %cst_8 = arith.constant 2.000000e+00 : f32
    %6 = vector.broadcast %cst_8 : f32 to vector<128x512xf32>
    %7 = arith.mulf %6, %5 : vector<128x512xf32>
    %8 = vector.broadcast %4 : vector<128x1xf32> to vector<128x512xf32>
    %9 = arith.subf %8, %7 : vector<128x512xf32>
    %cst_9 = arith.constant dense<0x7F800000> : vector<512xf32>
    %10 = vector.multi_reduction <minimumf>, %9, %cst_9 [0] : vector<128x512xf32> to vector<512xf32>
    %11 = vector.shape_cast %10 : vector<512xf32> to vector<1x512xf32>
    %12 = tpu.iota {dimensions = array<i32: 0>} : vector<128x512xi32>
    %13 = vector.broadcast %11 : vector<1x512xf32> to vector<128x512xf32>
    %14 = arith.cmpf oeq, %9, %13 : vector<128x512xf32>
    %c128_i32 = arith.constant 128 : i32
    %15 = vector.broadcast %c128_i32 : i32 to vector<128x512xi32>
    %16 = arith.select %14, %12, %15 : vector<128x512xi1>, vector<128x512xi32>
    %cst_10 = arith.constant dense<2147483647> : vector<512xi32>
    %17 = vector.multi_reduction <minsi>, %16, %cst_10 [0] : vector<128x512xi32> to vector<512xi32>
    %18 = vector.shape_cast %17 : vector<512xi32> to vector<1x512xi32>
    %19 = vector.broadcast %18 : vector<1x512xi32> to vector<128x512xi32>
    %20 = arith.cmpi eq, %12, %19 : vector<128x512xi32>
    %21 = arith.extui %20 : vector<128x512xi1> to vector<128x512xi32>
    %22 = arith.sitofp %21 : vector<128x512xi32> to vector<128x512xf32>
    %cst_11 = arith.constant dense<0.000000e+00> : vector<32x512xf32>
    %23 = tpu.matmul %3, %22, %cst_11 {dimension_numbers = #tpu.dot_dimension_numbers<[1], [0], [0], [1], [0, 0, 1, 1], [], []>} : vector<32x128xf32>, vector<128x512xf32>, vector<32x512xf32> -> vector<32x512xf32>
    %c0_12 = arith.constant 0 : index
    %c0_13 = arith.constant 0 : index
    %c0_14 = arith.constant 0 : index
    %24 = vector.load %arg6[%c0_12, %c0_13, %c0_14] : memref<1x32x512xf32, #tpu.memory_space<vmem>>, vector<1x32x512xf32>
    %25 = vector.shape_cast %24 : vector<1x32x512xf32> to vector<32x512xf32>
    %26 = vector.shape_cast %23 : vector<32x512xf32> to vector<1x32x512xf32>
    tpu.vector_store %arg6[%c0_12, %c0_13, %c0_14], %26 {strides = array<i32>} : memref<1x32x512xf32, #tpu.memory_space<vmem>>, vector<1x32x512xf32>,
    %27 = arith.subf %23, %1 : vector<32x512xf32>
    %28 = arith.mulf %27, %27 : vector<32x512xf32>
    %29 = vector.shape_cast %28 : vector<32x512xf32> to vector<1x32x512xf32>
    %cst_15 = arith.constant dense<0.000000e+00> : vector<1xf32>
    %30 = vector.multi_reduction <add>, %29, %cst_15 [1, 2] : vector<1x32x512xf32> to vector<1xf32>
    %31 = vector.shape_cast %30 : vector<1xf32> to vector<1x1x1xf32>
    %32 = vector.extract %31[0, 0, 0] : f32 from vector<1x1x1xf32>
    %33 = vector.broadcast %32 : f32 to vector<1x1x8x128xf32>
    %c0_16 = arith.constant 0 : index
    %c0_17 = arith.constant 0 : index
    %c0_18 = arith.constant 0 : index
    %c0_19 = arith.constant 0 : index
    %34 = vector.load %arg7[%c0_16, %c0_17, %c0_18, %c0_19] : memref<1x1x8x128xf32, #tpu.memory_space<vmem>>, vector<1x1x8x128xf32>
    tpu.vector_store %arg7[%c0_16, %c0_17, %c0_18, %c0_19], %33 {strides = array<i32>} : memref<1x1x8x128xf32, #tpu.memory_space<vmem>>, vector<1x1x8x128xf32>,
    return
  }
  func.func @transform_0(%arg0: i32, %arg1: i32) -> (i32, i32, i32) {
    %c0_i32 = arith.constant 0 : i32
    %c0_i32_0 = arith.constant 0 : i32
    return %arg0, %c0_i32, %arg1 : i32, i32, i32
  }
  func.func @transform_1(%arg0: i32, %arg1: i32) -> (i32, i32) {
    %c0_i32 = arith.constant 0 : i32
    %c0_i32_0 = arith.constant 0 : i32
    %c0_i32_1 = arith.constant 0 : i32
    return %c0_i32, %c0_i32_0 : i32, i32
  }
  func.func @transform_2(%arg0: i32, %arg1: i32) -> (i32, i32) {
    %c0_i32 = arith.constant 0 : i32
    %c0_i32_0 = arith.constant 0 : i32
    %c0_i32_1 = arith.constant 0 : i32
    return %c0_i32, %c0_i32_0 : i32, i32
  }
  func.func @transform_3(%arg0: i32, %arg1: i32) -> (i32, i32) {
    %c0_i32 = arith.constant 0 : i32
    %c0_i32_0 = arith.constant 0 : i32
    %c0_i32_1 = arith.constant 0 : i32
    return %c0_i32, %c0_i32_0 : i32, i32
  }
  func.func @transform_4(%arg0: i32, %arg1: i32) -> (i32, i32, i32) {
    %c0_i32 = arith.constant 0 : i32
    %c0_i32_0 = arith.constant 0 : i32
    return %arg0, %c0_i32, %arg1 : i32, i32, i32
  }
  func.func @transform_5(%arg0: i32, %arg1: i32) -> (i32, i32, i32, i32) {
    %c0_i32 = arith.constant 0 : i32
    %c0_i32_0 = arith.constant 0 : i32
    %c0_i32_1 = arith.constant 0 : i32
    return %arg0, %arg1, %c0_i32, %c0_i32_0 : i32, i32, i32, i32
  }
}

</mosaic_0001>

<llo_original>
// kernel: tpu_custom_call.1
$region0: #{tpu_custom_call.1}
  #allocation0 [shape = 'u32[]', space=smem, size = 0x4, offset = 0x4, fixed_abs, tag = 'smem constant byte address 0x4 - core index']
  #allocation1 [shape = 'u32[72,128]{1,0:T(1,128)}', space=vmem, size = 0x9000, scoped, tag = 'internal scratch']
  %s0 = inlined_call_operand.hbm [shape: f32[2,32,1024], index: 0, kind: input, shape index: {}]
  %s1 = inlined_call_operand.vmem [shape: f32[128,32], index: 1, kind: input, shape index: {}]
  %s2 = inlined_call_operand.vmem [shape: f32[32,128], index: 2, kind: input, shape index: {}]
  %s3 = inlined_call_operand.vmem [shape: f32[128,1], index: 3, kind: input, shape index: {}]
  %s4 = inlined_call_operand.hbm [shape: f32[2,32,1024], index: 4, kind: output, shape index: {0}]
  %s5 = inlined_call_operand.hbm [shape: f32[2,2,8,128], index: 5, kind: output, shape index: {1}]
  %6 = xla_tuple %s4, %s5
  %s7 = sld [smem:[#allocation0]]
  $region61: #{tpu_custom_call.1} parent=0
    _
  %s9 = ssub.s32 1, %s7
  %s10 = scalar_select 0, %s9, %s7
  $region1: #{tpu_custom_call.1} parent=0
    #allocation2 [shape = 'u8[131072]{0}', space=vmem, size = 0x20000, scoped, tag = 'input window, operand 0']
    #allocation3 [shape = 's32[2]{0}', space=sflag, size = 0x8, scoped, tag = 'scoped memory for tpu_custom_call.1']
    #allocation4 [shape = 's32[2]{0}', space=sflag, size = 0x8, scoped, tag = 'scoped memory for tpu_custom_call.1']
    #allocation5 [shape = 'u8[131072]{0}', space=vmem, size = 0x20000, scoped, tag = 'output window, operand 0']
    #allocation6 [shape = 'u8[8192]{0}', space=vmem, size = 0x2000, scoped, tag = 'output window, operand 1']
    #allocation7 [shape = 's32[2]{0}', space=sflag, size = 0x8, scoped, tag = 'scoped memory for tpu_custom_call.1']
    %11 = vsyncpa [#allocation3], 0
    %s12 = scalar_lea.sflag [#allocation3], 1
    %13 = vsyncpa %s12, 0
    %14 = vsyncpa [#allocation4], 0
    %s15 = scalar_lea.sflag [#allocation4], 1
    %16 = vsyncpa %s15, 0
    %17 = vsyncpa [#allocation7], 0
    %s18 = scalar_lea.sflag [#allocation7], 1
    %19 = vsyncpa %s18, 0
    loop: start=0, step=1, limit=6
    $region2: #{tpu_custom_call.1} parent=1 // loop_pre_header
      _
    $region3: #{tpu_custom_call.1} parent=1 // loop_header
      %s21 = sphi 0, %s25
      %p22 = scmp.ge.s32.totalorder %s21, 6
      %s28 = sphi 0, %s40
      %s29 = sphi 0, %s36
      %s30 = sphi 0, %s28
      %s31 = sphi 0, %s29
      %s32 = sphi 0, %s30
      %s33 = sphi 0, %s31
      %s45 = sphi 0, %s47
      %s48 = sphi 0, %s45
      %s49 = sphi 0, %s48
      %s65 = sphi 0, %s49
      %s69 = sphi 0, %s69
      %s71 = sphi 0, %s69
      %s72 = sphi 0, %s71
      %s86 = sphi 0, %s72
      %s90 = sphi 0, %s90
      %s92 = sphi 0, %s90
      %s93 = sphi 0, %s92
      %s107 = sphi 0, %s93
      %s111 = sphi 0, %s111
      %s113 = sphi 0, %s111
      %s114 = sphi 0, %s113
      %s128 = sphi 0, %s114
      %s136 = sphi 0, %s138
      %s139 = sphi 0, %s136
      %s140 = sphi 0, %s139
      %s156 = sphi 0, %s140
      %s164 = sphi 0, %s166
      %s167 = sphi 0, %s164
      %s168 = sphi 0, %s167
      %s184 = sphi 0, %s168
    $region4: #{tpu_custom_call.1} parent=1 // loop_header_branch
      %24 = sbr.rel (%p22) target = $region8
    $region5: #{tpu_custom_call.1} parent=1 // loop_body
      %s26 = ssub.s32 %s21, 1
      %s27 = ssub.s32 %s21, 2
      %s34 = sadd.s32 1, %s29
      %p35 = scmp.ge.s32.totalorder %s34, 2
      %s36 = scalar_select %p35, 0, %s34
      %s37 = sadd.s32 1, %s28
      %s38 = scalar_select %p35, %s37, %s28
      %p39 = scmp.ge.s32.totalorder %s38, 2
      %s40 = scalar_select %p39, 0, %s38
      %s41 = ssub.s32 %s28, %s40
      %s42 = ssub.s32 %s29, %s36
      %s43 = sor.u32 %s41, %s42
      %p44 = scmp.eq.s32.totalorder %s43, 0
      %s46 = sadd.s32 %s45, 1
      %s47 = scalar_select %p44, %s45, %s46
      %p50 = pneg %p44
      %p51 = scmp.eq.s32.totalorder %s21, 3
      %p52 = por %p50, %p51
      %p53 = scmp.ne.s32.totalorder %s45, %s48
      %p54 = scmp.eq.s32.totalorder %s21, 0
      %p55 = por %p53, %p54
      %p56 = scmp.ne.s32.totalorder %s45, %s48
      %p57 = scmp.eq.s32.totalorder %s26, 3
      %p58 = por %p56, %p57
      %p59 = scmp.ne.s32.totalorder %s48, %s49
      %p60 = scmp.eq.s32.totalorder %s26, 0
      %p61 = por %p59, %p60
      %p62 = scmp.ne.s32.totalorder %s48, %s49
      %p63 = scmp.eq.s32.totalorder %s27, 3
      %p64 = por %p62, %p63
      %p66 = scmp.ne.s32.totalorder %s49, %s65
      %p67 = scmp.eq.s32.totalorder %s27, 0
      %p68 = por %p66, %p67
      %s70 = sadd.s32 %s69, 1
      %p73 = scmp.eq.s32.totalorder %s21, 3
      %p74 = scmp.ne.s32.totalorder %s69, %s71
      %p75 = scmp.eq.s32.totalorder %s21, 0
      %p76 = por %p74, %p75
      %p77 = scmp.ne.s32.totalorder %s69, %s71
      %p78 = scmp.eq.s32.totalorder %s26, 3
      %p79 = por %p77, %p78
      %p80 = scmp.ne.s32.totalorder %s71, %s72
      %p81 = scmp.eq.s32.totalorder %s26, 0
      %p82 = por %p80, %p81
      %p83 = scmp.ne.s32.totalorder %s71, %s72
      %p84 = scmp.eq.s32.totalorder %s27, 3
      %p85 = por %p83, %p84
      %p87 = scmp.ne.s32.totalorder %s72, %s86
      %p88 = scmp.eq.s32.totalorder %s27, 0
      %p89 = por %p87, %p88
      %s91 = sadd.s32 %s90, 1
      %p94 = scmp.eq.s32.totalorder %s21, 3
      %p95 = scmp.ne.s32.totalorder %s90, %s92
      %p96 = scmp.eq.s32.totalorder %s21, 0
      %p97 = por %p95, %p96
      %p98 = scmp.ne.s32.totalorder %s90, %s92
      %p99 = scmp.eq.s32.totalorder %s26, 3
      %p100 = por %p98, %p99
      %p101 = scmp.ne.s32.totalorder %s92, %s93
      %p102 = scmp.eq.s32.totalorder %s26, 0
      %p103 = por %p101, %p102
      %p104 = scmp.ne.s32.totalorder %s92, %s93
      %p105 = scmp.eq.s32.totalorder %s27, 3
      %p106 = por %p104, %p105
      %p108 = scmp.ne.s32.totalorder %s93, %s107
      %p109 = scmp.eq.s32.totalorder %s27, 0
      %p110 = por %p108, %p109
      %s112 = sadd.s32 %s111, 1
      %p115 = scmp.eq.s32.totalorder %s21, 3
      %p116 = scmp.ne.s32.totalorder %s111, %s113
      %p117 = scmp.eq.s32.totalorder %s21, 0
      %p118 = por %p116, %p117
      %p119 = scmp.ne.s32.totalorder %s111, %s113
      %p120 = scmp.eq.s32.totalorder %s26, 3
      %p121 = por %p119, %p120
      %p122 = scmp.ne.s32.totalorder %s113, %s114
      %p123 = scmp.eq.s32.totalorder %s26, 0
      %p124 = por %p122, %p123
      %p125 = scmp.ne.s32.totalorder %s113, %s114
      %p126 = scmp.eq.s32.totalorder %s27, 3
      %p127 = por %p125, %p126
      %p129 = scmp.ne.s32.totalorder %s114, %s128
      %p130 = scmp.eq.s32.totalorder %s27, 0
      %p131 = por %p129, %p130
      %s132 = ssub.s32 %s28, %s40
      %s133 = ssub.s32 %s29, %s36
      %s134 = sor.u32 %s132, %s133
      %p135 = scmp.eq.s32.totalorder %s134, 0
      %s137 = sadd.s32 %s136, 1
      %s138 = scalar_select %p135, %s136, %s137
      %p141 = pneg %p135
      %p142 = scmp.eq.s32.totalorder %s21, 3
      %p143 = por %p141, %p142
      %p144 = scmp.ne.s32.totalorder %s136, %s139
      %p145 = scmp.eq.s32.totalorder %s21, 0
      %p146 = por %p144, %p145
      %p147 = scmp.ne.s32.totalorder %s136, %s139
      %p148 = scmp.eq.s32.totalorder %s26, 3
      %p149 = por %p147, %p148
      %p150 = scmp.ne.s32.totalorder %s139, %s140
      %p151 = scmp.eq.s32.totalorder %s26, 0
      %p152 = por %p150, %p151
      %p153 = scmp.ne.s32.totalorder %s139, %s140
      %p154 = scmp.eq.s32.totalorder %s27, 3
      %p155 = por %p153, %p154
      %p157 = scmp.ne.s32.totalorder %s140, %s156
      %p158 = scmp.eq.s32.totalorder %s27, 0
      %p159 = por %p157, %p158
      %s160 = ssub.s32 %s28, %s40
      %s161 = ssub.s32 %s29, %s36
      %s162 = sor.u32 %s160, %s161
      %p163 = scmp.eq.s32.totalorder %s162, 0
      %s165 = sadd.s32 %s164, 1
      %s166 = scalar_select %p163, %s164, %s165
      %p169 = pneg %p163
      %p170 = scmp.eq.s32.totalorder %s21, 3
      %p171 = por %p169, %p170
      %p172 = scmp.ne.s32.totalorder %s164, %s167
      %p173 = scmp.eq.s32.totalorder %s21, 0
      %p174 = por %p172, %p173
      %p175 = scmp.ne.s32.totalorder %s164, %s167
      %p176 = scmp.eq.s32.totalorder %s26, 3
      %p177 = por %p175, %p176
      %p178 = scmp.ne.s32.totalorder %s167, %s168
      %p179 = scmp.eq.s32.totalorder %s26, 0
      %p180 = por %p178, %p179
      %p181 = scmp.ne.s32.totalorder %s167, %s168
      %p182 = scmp.eq.s32.totalorder %s27, 3
      %p183 = por %p181, %p182
      %p185 = scmp.ne.s32.totalorder %s168, %s184
      %p186 = scmp.eq.s32.totalorder %s27, 0
      %p187 = por %p185, %p186
      %p188 = scmp.le.s32.totalorder 1, %s21
      %p189 = scmp.lt.s32.totalorder %s21, 5
      %p190 = pnand %p188, %p189
      %p191 = pneg %p190
      // Predicated region
      $region9: #{tpu_custom_call.1} parent=5 // pred_check
        _
      $region10: #{tpu_custom_call.1} parent=5 // pred_check_branch
        %193 = sbr.rel (%p190) target = $region12
      $region11: #{tpu_custom_call.1} parent=5 // pred_region
        %s194 = ssub.s32 %s21, 1
        // Predicated region
        $region13: #{tpu_custom_call.1} parent=11 // pred_check
          %p195 = pneg %p82
        $region14: #{tpu_custom_call.1} parent=11 // pred_check_branch
          %197 = sbr.rel (%p195) target = $region16
        $region15: #{tpu_custom_call.1} parent=11 // pred_region
          _
        $region16: #{tpu_custom_call.1} parent=11 // pred_fallthru
          _
        // Predicated region
        $region17: #{tpu_custom_call.1} parent=11 // pred_check
          %p198 = pneg %p103
        $region18: #{tpu_custom_call.1} parent=11 // pred_check_branch
          %200 = sbr.rel (%p198) target = $region20
        $region19: #{tpu_custom_call.1} parent=11 // pred_region
          _
        $region20: #{tpu_custom_call.1} parent=11 // pred_fallthru
          _
        // Predicated region
        $region21: #{tpu_custom_call.1} parent=11 // pred_check
          %p201 = pneg %p124
        $region22: #{tpu_custom_call.1} parent=11 // pred_check_branch
          %203 = sbr.rel (%p201) target = $region24
        $region23: #{tpu_custom_call.1} parent=11 // pred_region
          _
        $region24: #{tpu_custom_call.1} parent=11 // pred_fallthru
          _
      $region12: #{tpu_custom_call.1} parent=5 // pred_fallthru
        _
      %p204 = scmp.lt.s32.totalorder %s21, 4
      // Predicated region
      $region25: #{tpu_custom_call.1} parent=5 // pred_check
        %p205 = pneg %p204
      $region26: #{tpu_custom_call.1} parent=5 // pred_check_branch
        %207 = sbr.rel (%p205) target = $region28
      $region27: #{tpu_custom_call.1} parent=5 // pred_region
        // Predicated region
        $region29: #{tpu_custom_call.1} parent=27 // pred_check
          %p208 = pneg %p55
        $region30: #{tpu_custom_call.1} parent=27 // pred_check_branch
          %210 = sbr.rel (%p208) target = $region32
        $region31: #{tpu_custom_call.1} parent=27 // pred_region
          %s211 = sand.u32 %s45, 1
          %s212 = scalar_lea.sflag [#allocation3], %s211
          %s213 = sand.u32 %s45, 1
          %s214 = smul.addr %s213, 128
          %s215 = scalar_lea.vmem [#allocation2], %s214
          %s216 = smul.u32 4, %s29
          %218 = vsyncadd %s212, 0
          %s219 = smul.addr %s28, 32
          %s220 = sadd.s32 %s216, %s219
          %s221 = smul.addr %s220, 8
          %s222 = scalar_lea.hbm %s0, %s221
          %s223 = sshll.u32 %s222, 4
          %s224 = int_to_ptr.hbm [resolvable:$true] %s223
          %s225 = sshll.u32 %s215, 4
          %s226 = int_to_ptr.vmem [resolvable:$true] %s225
          %231 = dma.hbm_to_vmem [thread:$0]  %s224, 2048, %s226, %s212, 1024, 512, 32
        $region32: #{tpu_custom_call.1} parent=27 // pred_fallthru
          _
      $region28: #{tpu_custom_call.1} parent=5 // pred_fallthru
        _
      %p232 = scmp.le.s32.totalorder 1, %s21
      %p233 = scmp.lt.s32.totalorder %s21, 5
      %p234 = pnand %p232, %p233
      %p235 = pneg %p234
      // Predicated region
      $region33: #{tpu_custom_call.1} parent=5 // pred_check
        _
      $region34: #{tpu_custom_call.1} parent=5 // pred_check_branch
        %237 = sbr.rel (%p234) target = $region36
      $region35: #{tpu_custom_call.1} parent=5 // pred_region
        %s238 = ssub.s32 %s21, 1
        %s239 = sand.u32 %s48, 1
        %s240 = scalar_lea.sflag [#allocation3], %s239
        %s241 = sand.u32 %s48, 1
        %s242 = smul.addr %s241, 128
        %s243 = scalar_lea.vmem [#allocation2], %s242
        // Predicated region
        $region37: #{tpu_custom_call.1} parent=35 // pred_check
          %p244 = pneg %p61
        $region38: #{tpu_custom_call.1} parent=35 // pred_check_branch
          %246 = sbr.rel (%p244) target = $region40
        $region39: #{tpu_custom_call.1} parent=35 // pred_region
          %248 = dma.done %s240, 2048
        $region40: #{tpu_custom_call.1} parent=35 // pred_fallthru
          _
        %s249 = sand.u32 %s48, 1
        %s250 = scalar_lea.sflag [#allocation3], %s249
        %s251 = sand.u32 %s48, 1
        %s252 = smul.addr %s251, 128
        %s253 = scalar_lea.vmem [#allocation2], %s252
        %p254 = pneg %p61
        %p255 = pneg %p58
        %p256 = pneg %p82
        %p257 = pneg %p79
        %p258 = pneg %p103
        %p259 = pneg %p100
        %p260 = pneg %p124
        %p261 = pneg %p121
        %p262 = pneg %p152
        %p263 = pneg %p149
        %s264 = sand.u32 %s139, 1
        %s265 = scalar_lea.sflag [#allocation4], %s264
        %s266 = sand.u32 %s139, 1
        %s267 = smul.addr %s266, 128
        %s268 = scalar_lea.vmem [#allocation5], %s267
        %p269 = pneg %p180
        %p270 = pneg %p177
        %s271 = sand.u32 %s167, 1
        %s272 = scalar_lea.sflag [#allocation7], %s271
        %s273 = sand.u32 %s167, 1
        %s274 = smul.addr %s273, 8
        %s275 = scalar_lea.vmem [#allocation6], %s274
        %s276 = smul.u32 4, %s31
        %s277 = smul.u32 4, %s31
        %v278 = vld [vmem:[%s243] sm:$0xff]
        %v279 = vld [vmem:[%s243 + $0x8] sm:$0xff]
        %v280 = vld [vmem:[%s243 + $0x10] sm:$0xff]
        %v281 = vld [vmem:[%s243 + $0x18] sm:$0xff]
        %v282 = vld [vmem:[%s243 + $0x20] sm:$0xff]
        %v283 = vld [vmem:[%s243 + $0x28] sm:$0xff]
        %v284 = vld [vmem:[%s243 + $0x30] sm:$0xff]
        %v285 = vld [vmem:[%s243 + $0x38] sm:$0xff]
        %v286 = vld [vmem:[%s243 + $0x40] sm:$0xff]
        %v287 = vld [vmem:[%s243 + $0x48] sm:$0xff]
        %v288 = vld [vmem:[%s243 + $0x50] sm:$0xff]
        %v289 = vld [vmem:[%s243 + $0x58] sm:$0xff]
        %v290 = vld [vmem:[%s243 + $0x60] sm:$0xff]
        %v291 = vld [vmem:[%s243 + $0x68] sm:$0xff]
        %v292 = vld [vmem:[%s243 + $0x70] sm:$0xff]
        %v293 = vld [vmem:[%s243 + $0x78] sm:$0xff]
        %v294 = vld [vmem:[%s1] sm:$0xff]
        %v295 = vld [vmem:[%s1 + $0x8] sm:$0xff]
        %v296 = vld [vmem:[%s1 + $0x10] sm:$0xff]
        %v297 = vld [vmem:[%s1 + $0x18] sm:$0xff]
        %v298 = vld [vmem:[%s1 + $0x20] sm:$0xff]
        %v299 = vld [vmem:[%s1 + $0x28] sm:$0xff]
        %v300 = vld [vmem:[%s1 + $0x30] sm:$0xff]
        %v301 = vld [vmem:[%s1 + $0x38] sm:$0xff]
        %v302 = vld [vmem:[%s1 + $0x40] sm:$0xff]
        %v303 = vld [vmem:[%s1 + $0x48] sm:$0xff]
        %v304 = vld [vmem:[%s1 + $0x50] sm:$0xff]
        %v305 = vld [vmem:[%s1 + $0x58] sm:$0xff]
        %v306 = vld [vmem:[%s1 + $0x60] sm:$0xff]
        %v307 = vld [vmem:[%s1 + $0x68] sm:$0xff]
        %v308 = vld [vmem:[%s1 + $0x70] sm:$0xff]
        %v309 = vld [vmem:[%s1 + $0x78] sm:$0xff]
        %v310 = vld [vmem:[%s2] sm:$0xff]
        %v311 = vld [vmem:[%s2 + $0x8] sm:$0xff]
        %v312 = vld [vmem:[%s2 + $0x10] sm:$0xff]
        %v313 = vld [vmem:[%s2 + $0x18] sm:$0xff]
        %v314 = vld [vmem:[%s3] sm:$0xff]
        %v315 = vld [vmem:[%s3 + $0x8] sm:$0xff]
        %v316 = vld [vmem:[%s3 + $0x10] sm:$0xff]
        %v317 = vld [vmem:[%s3 + $0x18] sm:$0xff]
        %v318 = vld [vmem:[%s3 + $0x20] sm:$0xff]
        %v319 = vld [vmem:[%s3 + $0x28] sm:$0xff]
        %v320 = vld [vmem:[%s3 + $0x30] sm:$0xff]
        %v321 = vld [vmem:[%s3 + $0x38] sm:$0xff]
        %v322 = vld [vmem:[%s3 + $0x40] sm:$0xff]
        %v323 = vld [vmem:[%s3 + $0x48] sm:$0xff]
        %v324 = vld [vmem:[%s3 + $0x50] sm:$0xff]
        %v325 = vld [vmem:[%s3 + $0x58] sm:$0xff]
        %v326 = vld [vmem:[%s3 + $0x60] sm:$0xff]
        %v327 = vld [vmem:[%s3 + $0x68] sm:$0xff]
        %v328 = vld [vmem:[%s3 + $0x70] sm:$0xff]
        %v329 = vld [vmem:[%s3 + $0x78] sm:$0xff]
        %vm330 = vcmask 261120
        %v332 = vsel %vm330, %v294, 0
        %v335 = vsel %vm330, %v295, 0
        %v338 = vsel %vm330, %v296, 0
        %v341 = vsel %vm330, %v297, 0
        %v344 = vsel %vm330, %v298, 0
        %v347 = vsel %vm330, %v299, 0
        %v350 = vsel %vm330, %v300, 0
        %v353 = vsel %vm330, %v301, 0
        %v356 = vsel %vm330, %v302, 0
        %v359 = vsel %vm330, %v303, 0
        %v362 = vsel %vm330, %v304, 0
        %v365 = vsel %vm330, %v305, 0
        %v368 = vsel %vm330, %v306, 0
        %v371 = vsel %vm330, %v307, 0
        %v374 = vsel %vm330, %v308, 0
        %v377 = vsel %vm330, %v309, 0
        %379 = vmatpush.msra.mxu0 0.0
        %380 = vmatpush.msra.mxu0 0.0
        %381 = vmatpush.msra.mxu0 0.0
        %382 = vmatpush.msra.mxu0 0.0
        %383 = vmatpush.msra.mxu0 0.0
        %384 = vmatpush.msra.mxu0 0.0
        %385 = vmatpush.msra.mxu0 0.0
        %386 = vmatpush.msra.mxu0 0.0
        %387 = vmatpush.msra.mxu0 0.0
        %388 = vmatpush.msra.mxu0 0.0
        %389 = vmatpush.msra.mxu0 0.0
        %390 = vmatpush.msra.mxu0 0.0
        %391 = vmatpush.msra.mxu0 %v290
        %392 = vmatpush.msra.mxu0 %v286
        %393 = vmatpush.msra.mxu0 %v282
        %394 = vmatpush.msra.mxu0 %v278
        %395 = vmatmul.f32.gmra.mxu0 %v332
        %v396 = vpop.f32.mrf.mxu0
        %v397 = vadd.f32 0.0, %v396
        %398 = vmatmul.f32.gmra.mxu0 %v335
        %v399 = vpop.f32.mrf.mxu0
        %v400 = vadd.f32 0.0, %v399
        %401 = vmatmul.f32.gmra.mxu0 %v338
        %v402 = vpop.f32.mrf.mxu0
        %v403 = vadd.f32 0.0, %v402
        %404 = vmatmul.f32.gmra.mxu0 %v341
        %v405 = vpop.f32.mrf.mxu0
        %v406 = vadd.f32 0.0, %v405
        %407 = vmatmul.f32.gmra.mxu0 %v344
        %v408 = vpop.f32.mrf.mxu0
        %v409 = vadd.f32 0.0, %v408
        %410 = vmatmul.f32.gmra.mxu0 %v347
        %v411 = vpop.f32.mrf.mxu0
        %v412 = vadd.f32 0.0, %v411
        %413 = vmatmul.f32.gmra.mxu0 %v350
        %v414 = vpop.f32.mrf.mxu0
        %v415 = vadd.f32 0.0, %v414
        %416 = vmatmul.f32.gmra.mxu0 %v353
        %v417 = vpop.f32.mrf.mxu0
        %v418 = vadd.f32 0.0, %v417
        %419 = vmatmul.f32.gmra.mxu0 %v356
        %v420 = vpop.f32.mrf.mxu0
        %v421 = vadd.f32 0.0, %v420
        %422 = vmatmul.f32.gmra.mxu0 %v359
        %v423 = vpop.f32.mrf.mxu0
        %v424 = vadd.f32 0.0, %v423
        %425 = vmatmul.f32.gmra.mxu0 %v362
        %v426 = vpop.f32.mrf.mxu0
        %v427 = vadd.f32 0.0, %v426
        %428 = vmatmul.f32.gmra.mxu0 %v365
        %v429 = vpop.f32.mrf.mxu0
        %v430 = vadd.f32 0.0, %v429
        %431 = vmatmul.f32.gmra.mxu0 %v368
        %v432 = vpop.f32.mrf.mxu0
        %v433 = vadd.f32 0.0, %v432
        %434 = vmatmul.f32.gmra.mxu0 %v371
        %v435 = vpop.f32.mrf.mxu0
        %v436 = vadd.f32 0.0, %v435
        %437 = vmatmul.f32.gmra.mxu0 %v374
        %v438 = vpop.f32.mrf.mxu0
        %v439 = vadd.f32 0.0, %v438
        %440 = vmatmul.f32.gmra.mxu0 %v377
        %v441 = vpop.f32.mrf.mxu0
        %v442 = vadd.f32 0.0, %v441
        %443 = vdwg.mxu0
        %444 = vmatpush.msra.mxu0 0.0
        %445 = vmatpush.msra.mxu0 0.0
        %446 = vmatpush.msra.mxu0 0.0
        %447 = vmatpush.msra.mxu0 0.0
        %448 = vmatpush.msra.mxu0 0.0
        %449 = vmatpush.msra.mxu0 0.0
        %450 = vmatpush.msra.mxu0 0.0
        %451 = vmatpush.msra.mxu0 0.0
        %452 = vmatpush.msra.mxu0 0.0
        %453 = vmatpush.msra.mxu0 0.0
        %454 = vmatpush.msra.mxu0 0.0
        %455 = vmatpush.msra.mxu0 0.0
        %456 = vmatpush.msra.mxu0 %v291
        %457 = vmatpush.msra.mxu0 %v287
        %458 = vmatpush.msra.mxu0 %v283
        %459 = vmatpush.msra.mxu0 %v279
        %460 = vmatmul.f32.gmra.mxu0 %v332
        %v461 = vpop.f32.mrf.mxu0
        %v462 = vadd.f32 0.0, %v461
        %463 = vmatmul.f32.gmra.mxu0 %v335
        %v464 = vpop.f32.mrf.mxu0
        %v465 = vadd.f32 0.0, %v464
        %466 = vmatmul.f32.gmra.mxu0 %v338
        %v467 = vpop.f32.mrf.mxu0
        %v468 = vadd.f32 0.0, %v467
        %469 = vmatmul.f32.gmra.mxu0 %v341
        %v470 = vpop.f32.mrf.mxu0
        %v471 = vadd.f32 0.0, %v470
        %472 = vmatmul.f32.gmra.mxu0 %v344
        %v473 = vpop.f32.mrf.mxu0
        %v474 = vadd.f32 0.0, %v473
        %475 = vmatmul.f32.gmra.mxu0 %v347
        %v476 = vpop.f32.mrf.mxu0
        %v477 = vadd.f32 0.0, %v476
        %478 = vmatmul.f32.gmra.mxu0 %v350
        %v479 = vpop.f32.mrf.mxu0
        %v480 = vadd.f32 0.0, %v479
        %481 = vmatmul.f32.gmra.mxu0 %v353
        %v482 = vpop.f32.mrf.mxu0
        %v483 = vadd.f32 0.0, %v482
        %484 = vmatmul.f32.gmra.mxu0 %v356
        %v485 = vpop.f32.mrf.mxu0
        %v486 = vadd.f32 0.0, %v485
        %487 = vmatmul.f32.gmra.mxu0 %v359
        %v488 = vpop.f32.mrf.mxu0
        %v489 = vadd.f32 0.0, %v488
        %490 = vmatmul.f32.gmra.mxu0 %v362
        %v491 = vpop.f32.mrf.mxu0
        %v492 = vadd.f32 0.0, %v491
        %493 = vmatmul.f32.gmra.mxu0 %v365
        %v494 = vpop.f32.mrf.mxu0
        %v495 = vadd.f32 0.0, %v494
        %496 = vmatmul.f32.gmra.mxu0 %v368
        %v497 = vpop.f32.mrf.mxu0
        %v498 = vadd.f32 0.0, %v497
        %499 = vmatmul.f32.gmra.mxu0 %v371
        %v500 = vpop.f32.mrf.mxu0
        %v501 = vadd.f32 0.0, %v500
        %502 = vmatmul.f32.gmra.mxu0 %v374
        %v503 = vpop.f32.mrf.mxu0
        %v504 = vadd.f32 0.0, %v503
        %505 = vmatmul.f32.gmra.mxu0 %v377
        %v506 = vpop.f32.mrf.mxu0
        %v507 = vadd.f32 0.0, %v506
        %508 = vdwg.mxu0
        %509 = vmatpush.msra.mxu0 0.0
        %510 = vmatpush.msra.mxu0 0.0
        %511 = vmatpush.msra.mxu0 0.0
        %512 = vmatpush.msra.mxu0 0.0
        %513 = vmatpush.msra.mxu0 0.0
        %514 = vmatpush.msra.mxu0 0.0
        %515 = vmatpush.msra.mxu0 0.0
        %516 = vmatpush.msra.mxu0 0.0
        %517 = vmatpush.msra.mxu0 0.0
        %518 = vmatpush.msra.mxu0 0.0
        %519 = vmatpush.msra.mxu0 0.0
        %520 = vmatpush.msra.mxu0 0.0
        %521 = vmatpush.msra.mxu0 %v292
        %522 = vmatpush.msra.mxu0 %v288
        %523 = vmatpush.msra.mxu0 %v284
        %524 = vmatpush.msra.mxu0 %v280
        %525 = vmatmul.f32.gmra.mxu0 %v332
        %v526 = vpop.f32.mrf.mxu0
        %v527 = vadd.f32 0.0, %v526
        %528 = vmatmul.f32.gmra.mxu0 %v335
        %v529 = vpop.f32.mrf.mxu0
        %v530 = vadd.f32 0.0, %v529
        %531 = vmatmul.f32.gmra.mxu0 %v338
        %v532 = vpop.f32.mrf.mxu0
        %v533 = vadd.f32 0.0, %v532
        %534 = vmatmul.f32.gmra.mxu0 %v341
        %v535 = vpop.f32.mrf.mxu0
        %v536 = vadd.f32 0.0, %v535
        %537 = vmatmul.f32.gmra.mxu0 %v344
        %v538 = vpop.f32.mrf.mxu0
        %v539 = vadd.f32 0.0, %v538
        %540 = vmatmul.f32.gmra.mxu0 %v347
        %v541 = vpop.f32.mrf.mxu0
        %v542 = vadd.f32 0.0, %v541
        %543 = vmatmul.f32.gmra.mxu0 %v350
        %v544 = vpop.f32.mrf.mxu0
        %v545 = vadd.f32 0.0, %v544
        %546 = vmatmul.f32.gmra.mxu0 %v353
        %v547 = vpop.f32.mrf.mxu0
        %v548 = vadd.f32 0.0, %v547
        %549 = vmatmul.f32.gmra.mxu0 %v356
        %v550 = vpop.f32.mrf.mxu0
        %v551 = vadd.f32 0.0, %v550
        %552 = vmatmul.f32.gmra.mxu0 %v359
        %v553 = vpop.f32.mrf.mxu0
        %v554 = vadd.f32 0.0, %v553
        %555 = vmatmul.f32.gmra.mxu0 %v362
        %v556 = vpop.f32.mrf.mxu0
        %v557 = vadd.f32 0.0, %v556
        %558 = vmatmul.f32.gmra.mxu0 %v365
        %v559 = vpop.f32.mrf.mxu0
        %v560 = vadd.f32 0.0, %v559
        %561 = vmatmul.f32.gmra.mxu0 %v368
        %v562 = vpop.f32.mrf.mxu0
        %v563 = vadd.f32 0.0, %v562
        %564 = vmatmul.f32.gmra.mxu0 %v371
        %v565 = vpop.f32.mrf.mxu0
        %v566 = vadd.f32 0.0, %v565
        %567 = vmatmul.f32.gmra.mxu0 %v374
        %v568 = vpop.f32.mrf.mxu0
        %v569 = vadd.f32 0.0, %v568
        %570 = vmatmul.f32.gmra.mxu0 %v377
        %v571 = vpop.f32.mrf.mxu0
        %v572 = vadd.f32 0.0, %v571
        %573 = vdwg.mxu0
        %574 = vmatpush.msra.mxu0 0.0
        %575 = vmatpush.msra.mxu0 0.0
        %576 = vmatpush.msra.mxu0 0.0
        %577 = vmatpush.msra.mxu0 0.0
        %578 = vmatpush.msra.mxu0 0.0
        %579 = vmatpush.msra.mxu0 0.0
        %580 = vmatpush.msra.mxu0 0.0
        %581 = vmatpush.msra.mxu0 0.0
        %582 = vmatpush.msra.mxu0 0.0
        %583 = vmatpush.msra.mxu0 0.0
        %584 = vmatpush.msra.mxu0 0.0
        %585 = vmatpush.msra.mxu0 0.0
        %586 = vmatpush.msra.mxu0 %v293
        %587 = vmatpush.msra.mxu0 %v289
        %588 = vmatpush.msra.mxu0 %v285
        %589 = vmatpush.msra.mxu0 %v281
        %590 = vmatmul.f32.gmra.mxu0 %v332
        %v591 = vpop.f32.mrf.mxu0
        %v592 = vadd.f32 0.0, %v591
        %593 = vmatmul.f32.gmra.mxu0 %v335
        %v594 = vpop.f32.mrf.mxu0
        %v595 = vadd.f32 0.0, %v594
        %596 = vmatmul.f32.gmra.mxu0 %v338
        %v597 = vpop.f32.mrf.mxu0
        %v598 = vadd.f32 0.0, %v597
        %599 = vmatmul.f32.gmra.mxu0 %v341
        %v600 = vpop.f32.mrf.mxu0
        %v601 = vadd.f32 0.0, %v600
        %602 = vmatmul.f32.gmra.mxu0 %v344
        %v603 = vpop.f32.mrf.mxu0
        %v604 = vadd.f32 0.0, %v603
        %605 = vmatmul.f32.gmra.mxu0 %v347
        %v606 = vpop.f32.mrf.mxu0
        %v607 = vadd.f32 0.0, %v606
        %608 = vmatmul.f32.gmra.mxu0 %v350
        %v609 = vpop.f32.mrf.mxu0
        %v610 = vadd.f32 0.0, %v609
        %611 = vmatmul.f32.gmra.mxu0 %v353
        %v612 = vpop.f32.mrf.mxu0
        %v613 = vadd.f32 0.0, %v612
        %614 = vmatmul.f32.gmra.mxu0 %v356
        %v615 = vpop.f32.mrf.mxu0
        %v616 = vadd.f32 0.0, %v615
        %617 = vmatmul.f32.gmra.mxu0 %v359
        %v618 = vpop.f32.mrf.mxu0
        %v619 = vadd.f32 0.0, %v618
        %620 = vmatmul.f32.gmra.mxu0 %v362
        %v621 = vpop.f32.mrf.mxu0
        %v622 = vadd.f32 0.0, %v621
        %623 = vmatmul.f32.gmra.mxu0 %v365
        %v624 = vpop.f32.mrf.mxu0
        %v625 = vadd.f32 0.0, %v624
        %626 = vmatmul.f32.gmra.mxu0 %v368
        %v627 = vpop.f32.mrf.mxu0
        %v628 = vadd.f32 0.0, %v627
        %629 = vmatmul.f32.gmra.mxu0 %v371
        %v630 = vpop.f32.mrf.mxu0
        %v631 = vadd.f32 0.0, %v630
        %632 = vmatmul.f32.gmra.mxu0 %v374
        %v633 = vpop.f32.mrf.mxu0
        %v634 = vadd.f32 0.0, %v633
        %635 = vmatmul.f32.gmra.mxu0 %v377
        %v636 = vpop.f32.mrf.mxu0
        %v637 = vadd.f32 0.0, %v636
        %638 = vdwg.mxu0
        %v639 = vmul.f32 %v397, 2.0
        %v640 = vmul.f32 %v462, 2.0
        %v641 = vmul.f32 %v527, 2.0
        %v642 = vmul.f32 %v592, 2.0
        %v643 = vmul.f32 %v400, 2.0
        %v644 = vmul.f32 %v465, 2.0
        %v645 = vmul.f32 %v530, 2.0
        %v646 = vmul.f32 %v595, 2.0
        %v647 = vmul.f32 %v403, 2.0
        %v648 = vmul.f32 %v468, 2.0
        %v649 = vmul.f32 %v533, 2.0
        %v650 = vmul.f32 %v598, 2.0
        %v651 = vmul.f32 %v406, 2.0
        %v652 = vmul.f32 %v471, 2.0
        %v653 = vmul.f32 %v536, 2.0
        %v654 = vmul.f32 %v601, 2.0
        %v655 = vmul.f32 %v409, 2.0
        %v656 = vmul.f32 %v474, 2.0
        %v657 = vmul.f32 %v539, 2.0
        %v658 = vmul.f32 %v604, 2.0
        %v659 = vmul.f32 %v412, 2.0
        %v660 = vmul.f32 %v477, 2.0
        %v661 = vmul.f32 %v542, 2.0
        %v662 = vmul.f32 %v607, 2.0
        %v663 = vmul.f32 %v415, 2.0
        %v664 = vmul.f32 %v480, 2.0
        %v665 = vmul.f32 %v545, 2.0
        %v666 = vmul.f32 %v610, 2.0
        %v667 = vmul.f32 %v418, 2.0
        %v668 = vmul.f32 %v483, 2.0
        %v669 = vmul.f32 %v548, 2.0
        %v670 = vmul.f32 %v613, 2.0
        %v671 = vmul.f32 %v421, 2.0
        %v672 = vmul.f32 %v486, 2.0
        %v673 = vmul.f32 %v551, 2.0
        %v674 = vmul.f32 %v616, 2.0
        %v675 = vmul.f32 %v424, 2.0
        %v676 = vmul.f32 %v489, 2.0
        %v677 = vmul.f32 %v554, 2.0
        %v678 = vmul.f32 %v619, 2.0
        %v679 = vmul.f32 %v427, 2.0
        %v680 = vmul.f32 %v492, 2.0
        %v681 = vmul.f32 %v557, 2.0
        %v682 = vmul.f32 %v622, 2.0
        %v683 = vmul.f32 %v430, 2.0
        %v684 = vmul.f32 %v495, 2.0
        %v685 = vmul.f32 %v560, 2.0
        %v686 = vmul.f32 %v625, 2.0
        %v687 = vmul.f32 %v433, 2.0
        %v688 = vmul.f32 %v498, 2.0
        %v689 = vmul.f32 %v563, 2.0
        %v690 = vmul.f32 %v628, 2.0
        %v691 = vmul.f32 %v436, 2.0
        %v692 = vmul.f32 %v501, 2.0
        %v693 = vmul.f32 %v566, 2.0
        %v694 = vmul.f32 %v631, 2.0
        %v695 = vmul.f32 %v439, 2.0
        %v696 = vmul.f32 %v504, 2.0
        %v697 = vmul.f32 %v569, 2.0
        %v698 = vmul.f32 %v634, 2.0
        %v699 = vmul.f32 %v442, 2.0
        %v700 = vmul.f32 %v507, 2.0
        %v701 = vmul.f32 %v572, 2.0
        %v702 = vmul.f32 %v637, 2.0
        %704 = vset.pattern.permute.xlu0 0
        %705 = vperm.xlu0 %704, %v314
        %v706 = vpop.permute.xlu0 %705
        %709 = vset.pattern.permute.xlu0 0
        %710 = vperm.xlu0 %709, %v315
        %v711 = vpop.permute.xlu0 %710
        %714 = vset.pattern.permute.xlu0 0
        %715 = vperm.xlu0 %714, %v316
        %v716 = vpop.permute.xlu0 %715
        %719 = vset.pattern.permute.xlu0 0
        %720 = vperm.xlu0 %719, %v317
        %v721 = vpop.permute.xlu0 %720
        %724 = vset.pattern.permute.xlu0 0
        %725 = vperm.xlu0 %724, %v318
        %v726 = vpop.permute.xlu0 %725
        %729 = vset.pattern.permute.xlu0 0
        %730 = vperm.xlu0 %729, %v319
        %v731 = vpop.permute.xlu0 %730
        %734 = vset.pattern.permute.xlu0 0
        %735 = vperm.xlu0 %734, %v320
        %v736 = vpop.permute.xlu0 %735
        %739 = vset.pattern.permute.xlu0 0
        %740 = vperm.xlu0 %739, %v321
        %v741 = vpop.permute.xlu0 %740
        %744 = vset.pattern.permute.xlu0 0
        %745 = vperm.xlu0 %744, %v322
        %v746 = vpop.permute.xlu0 %745
        %749 = vset.pattern.permute.xlu0 0
        %750 = vperm.xlu0 %749, %v323
        %v751 = vpop.permute.xlu0 %750
        %754 = vset.pattern.permute.xlu0 0
        %755 = vperm.xlu0 %754, %v324
        %v756 = vpop.permute.xlu0 %755
        %759 = vset.pattern.permute.xlu0 0
        %760 = vperm.xlu0 %759, %v325
        %v761 = vpop.permute.xlu0 %760
        %764 = vset.pattern.permute.xlu0 0
        %765 = vperm.xlu0 %764, %v326
        %v766 = vpop.permute.xlu0 %765
        %769 = vset.pattern.permute.xlu0 0
        %770 = vperm.xlu0 %769, %v327
        %v771 = vpop.permute.xlu0 %770
        %774 = vset.pattern.permute.xlu0 0
        %775 = vperm.xlu0 %774, %v328
        %v776 = vpop.permute.xlu0 %775
        %779 = vset.pattern.permute.xlu0 0
        %780 = vperm.xlu0 %779, %v329
        %v781 = vpop.permute.xlu0 %780
        %v783 = vsub.f32 %v706, %v639
        %v784 = vsub.f32 %v706, %v640
        %v785 = vsub.f32 %v706, %v641
        %v786 = vsub.f32 %v706, %v642
        %v787 = vsub.f32 %v711, %v643
        %v788 = vsub.f32 %v711, %v644
        %v789 = vsub.f32 %v711, %v645
        %v790 = vsub.f32 %v711, %v646
        %v791 = vsub.f32 %v716, %v647
        %v792 = vsub.f32 %v716, %v648
        %v793 = vsub.f32 %v716, %v649
        %v794 = vsub.f32 %v716, %v650
        %v795 = vsub.f32 %v721, %v651
        %v796 = vsub.f32 %v721, %v652
        %v797 = vsub.f32 %v721, %v653
        %v798 = vsub.f32 %v721, %v654
        %v799 = vsub.f32 %v726, %v655
        %v800 = vsub.f32 %v726, %v656
        %v801 = vsub.f32 %v726, %v657
        %v802 = vsub.f32 %v726, %v658
        %v803 = vsub.f32 %v731, %v659
        %v804 = vsub.f32 %v731, %v660
        %v805 = vsub.f32 %v731, %v661
        %v806 = vsub.f32 %v731, %v662
        %v807 = vsub.f32 %v736, %v663
        %v808 = vsub.f32 %v736, %v664
        %v809 = vsub.f32 %v736, %v665
        %v810 = vsub.f32 %v736, %v666
        %v811 = vsub.f32 %v741, %v667
        %v812 = vsub.f32 %v741, %v668
        %v813 = vsub.f32 %v741, %v669
        %v814 = vsub.f32 %v741, %v670
        %v815 = vsub.f32 %v746, %v671
        %v816 = vsub.f32 %v746, %v672
        %v817 = vsub.f32 %v746, %v673
        %v818 = vsub.f32 %v746, %v674
        %v819 = vsub.f32 %v751, %v675
        %v820 = vsub.f32 %v751, %v676
        %v821 = vsub.f32 %v751, %v677
        %v822 = vsub.f32 %v751, %v678
        %v823 = vsub.f32 %v756, %v679
        %v824 = vsub.f32 %v756, %v680
        %v825 = vsub.f32 %v756, %v681
        %v826 = vsub.f32 %v756, %v682
        %v827 = vsub.f32 %v761, %v683
        %v828 = vsub.f32 %v761, %v684
        %v829 = vsub.f32 %v761, %v685
        %v830 = vsub.f32 %v761, %v686
        %v831 = vsub.f32 %v766, %v687
        %v832 = vsub.f32 %v766, %v688
        %v833 = vsub.f32 %v766, %v689
        %v834 = vsub.f32 %v766, %v690
        %v835 = vsub.f32 %v771, %v691
        %v836 = vsub.f32 %v771, %v692
        %v837 = vsub.f32 %v771, %v693
        %v838 = vsub.f32 %v771, %v694
        %v839 = vsub.f32 %v776, %v695
        %v840 = vsub.f32 %v776, %v696
        %v841 = vsub.f32 %v776, %v697
        %v842 = vsub.f32 %v776, %v698
        %v843 = vsub.f32 %v781, %v699
        %v844 = vsub.f32 %v781, %v700
        %v845 = vsub.f32 %v781, %v701
        %v846 = vsub.f32 %v781, %v702
        %v847 = vmin.f32 %v783, %v787
        %v848 = vmin.f32 %v847, %v791
        %v849 = vmin.f32 %v848, %v795
        %v850 = vmin.f32 %v849, %v799
        %v851 = vmin.f32 %v850, %v803
        %v852 = vmin.f32 %v851, %v807
        %v853 = vmin.f32 %v852, %v811
        %v854 = vmin.f32 %v853, %v815
        %v855 = vmin.f32 %v854, %v819
        %v856 = vmin.f32 %v855, %v823
        %v857 = vmin.f32 %v856, %v827
        %v858 = vmin.f32 %v857, %v831
        %v859 = vmin.f32 %v858, %v835
        %v860 = vmin.f32 %v859, %v839
        %v861 = vmin.f32 %v860, %v843
        %v862 = vrot.slane %v861, 4
        %v863 = vmin.f32 %v861, %v862
        %v864 = vrot.slane %v863, 2
        %v865 = vmin.f32 %v863, %v864
        %v866 = vrot.slane %v865, 1
        %v867 = vmin.f32 %v865, %v866
        %v868 = vmin.f32 %v784, %v788
        %v869 = vmin.f32 %v868, %v792
        %v870 = vmin.f32 %v869, %v796
        %v871 = vmin.f32 %v870, %v800
        %v872 = vmin.f32 %v871, %v804
        %v873 = vmin.f32 %v872, %v808
        %v874 = vmin.f32 %v873, %v812
        %v875 = vmin.f32 %v874, %v816
        %v876 = vmin.f32 %v875, %v820
        %v877 = vmin.f32 %v876, %v824
        %v878 = vmin.f32 %v877, %v828
        %v879 = vmin.f32 %v878, %v832
        %v880 = vmin.f32 %v879, %v836
        %v881 = vmin.f32 %v880, %v840
        %v882 = vmin.f32 %v881, %v844
        %v883 = vrot.slane %v882, 4
        %v884 = vmin.f32 %v882, %v883
        %v885 = vrot.slane %v884, 2
        %v886 = vmin.f32 %v884, %v885
        %v887 = vrot.slane %v886, 1
        %v888 = vmin.f32 %v886, %v887
        %v889 = vmin.f32 %v785, %v789
        %v890 = vmin.f32 %v889, %v793
        %v891 = vmin.f32 %v890, %v797
        %v892 = vmin.f32 %v891, %v801
        %v893 = vmin.f32 %v892, %v805
        %v894 = vmin.f32 %v893, %v809
        %v895 = vmin.f32 %v894, %v813
        %v896 = vmin.f32 %v895, %v817
        %v897 = vmin.f32 %v896, %v821
        %v898 = vmin.f32 %v897, %v825
        %v899 = vmin.f32 %v898, %v829
        %v900 = vmin.f32 %v899, %v833
        %v901 = vmin.f32 %v900, %v837
        %v902 = vmin.f32 %v901, %v841
        %v903 = vmin.f32 %v902, %v845
        %v904 = vrot.slane %v903, 4
        %v905 = vmin.f32 %v903, %v904
        %v906 = vrot.slane %v905, 2
        %v907 = vmin.f32 %v905, %v906
        %v908 = vrot.slane %v907, 1
        %v909 = vmin.f32 %v907, %v908
        %v910 = vmin.f32 %v786, %v790
        %v911 = vmin.f32 %v910, %v794
        %v912 = vmin.f32 %v911, %v798
        %v913 = vmin.f32 %v912, %v802
        %v914 = vmin.f32 %v913, %v806
        %v915 = vmin.f32 %v914, %v810
        %v916 = vmin.f32 %v915, %v814
        %v917 = vmin.f32 %v916, %v818
        %v918 = vmin.f32 %v917, %v822
        %v919 = vmin.f32 %v918, %v826
        %v920 = vmin.f32 %v919, %v830
        %v921 = vmin.f32 %v920, %v834
        %v922 = vmin.f32 %v921, %v838
        %v923 = vmin.f32 %v922, %v842
        %v924 = vmin.f32 %v923, %v846
        %v925 = vrot.slane %v924, 4
        %v926 = vmin.f32 %v924, %v925
        %v927 = vrot.slane %v926, 2
        %v928 = vmin.f32 %v926, %v927
        %v929 = vrot.slane %v928, 1
        %v930 = vmin.f32 %v928, %v929
        %v931 = vlaneseq
        %v932 = vshrl.u32 %v931, 7
        %v933 = vadd.s32 %v932, 8
        %v934 = vadd.s32 %v932, 16
        %v935 = vadd.s32 %v932, 24
        %v936 = vadd.s32 %v932, 32
        %v937 = vadd.s32 %v932, 40
        %v938 = vadd.s32 %v932, 48
        %v939 = vadd.s32 %v932, 56
        %v940 = vadd.s32 %v932, 64
        %v941 = vadd.s32 %v932, 72
        %v942 = vadd.s32 %v932, 80
        %v943 = vadd.s32 %v932, 88
        %v944 = vadd.s32 %v932, 96
        %v945 = vadd.s32 %v932, 104
        %v946 = vadd.s32 %v932, 112
        %v947 = vadd.s32 %v932, 120
        %vm948 = vcmp.eq.f32.partialorder %v783, %v867
        %vm949 = vcmp.eq.f32.partialorder %v784, %v888
        %vm950 = vcmp.eq.f32.partialorder %v785, %v909
        %vm951 = vcmp.eq.f32.partialorder %v786, %v930
        %vm952 = vcmp.eq.f32.partialorder %v787, %v867
        %vm953 = vcmp.eq.f32.partialorder %v788, %v888
        %vm954 = vcmp.eq.f32.partialorder %v789, %v909
        %vm955 = vcmp.eq.f32.partialorder %v790, %v930
        %vm956 = vcmp.eq.f32.partialorder %v791, %v867
        %vm957 = vcmp.eq.f32.partialorder %v792, %v888
        %vm958 = vcmp.eq.f32.partialorder %v793, %v909
        %vm959 = vcmp.eq.f32.partialorder %v794, %v930
        %vm960 = vcmp.eq.f32.partialorder %v795, %v867
        %vm961 = vcmp.eq.f32.partialorder %v796, %v888
        %vm962 = vcmp.eq.f32.partialorder %v797, %v909
        %vm963 = vcmp.eq.f32.partialorder %v798, %v930
        %vm964 = vcmp.eq.f32.partialorder %v799, %v867
        %vm965 = vcmp.eq.f32.partialorder %v800, %v888
        %vm966 = vcmp.eq.f32.partialorder %v801, %v909
        %vm967 = vcmp.eq.f32.partialorder %v802, %v930
        %vm968 = vcmp.eq.f32.partialorder %v803, %v867
        %vm969 = vcmp.eq.f32.partialorder %v804, %v888
        %vm970 = vcmp.eq.f32.partialorder %v805, %v909
        %vm971 = vcmp.eq.f32.partialorder %v806, %v930
        %vm972 = vcmp.eq.f32.partialorder %v807, %v867
        %vm973 = vcmp.eq.f32.partialorder %v808, %v888
        %vm974 = vcmp.eq.f32.partialorder %v809, %v909
        %vm975 = vcmp.eq.f32.partialorder %v810, %v930
        %vm976 = vcmp.eq.f32.partialorder %v811, %v867
        %vm977 = vcmp.eq.f32.partialorder %v812, %v888
        %vm978 = vcmp.eq.f32.partialorder %v813, %v909
        %vm979 = vcmp.eq.f32.partialorder %v814, %v930
        %vm980 = vcmp.eq.f32.partialorder %v815, %v867
        %vm981 = vcmp.eq.f32.partialorder %v816, %v888
        %vm982 = vcmp.eq.f32.partialorder %v817, %v909
        %vm983 = vcmp.eq.f32.partialorder %v818, %v930
        %vm984 = vcmp.eq.f32.partialorder %v819, %v867
        %vm985 = vcmp.eq.f32.partialorder %v820, %v888
        %vm986 = vcmp.eq.f32.partialorder %v821, %v909
        %vm987 = vcmp.eq.f32.partialorder %v822, %v930
        %vm988 = vcmp.eq.f32.partialorder %v823, %v867
        %vm989 = vcmp.eq.f32.partialorder %v824, %v888
        %vm990 = vcmp.eq.f32.partialorder %v825, %v909
        %vm991 = vcmp.eq.f32.partialorder %v826, %v930
        %vm992 = vcmp.eq.f32.partialorder %v827, %v867
        %vm993 = vcmp.eq.f32.partialorder %v828, %v888
        %vm994 = vcmp.eq.f32.partialorder %v829, %v909
        %vm995 = vcmp.eq.f32.partialorder %v830, %v930
        %vm996 = vcmp.eq.f32.partialorder %v831, %v867
        %vm997 = vcmp.eq.f32.partialorder %v832, %v888
        %vm998 = vcmp.eq.f32.partialorder %v833, %v909
        %vm999 = vcmp.eq.f32.partialorder %v834, %v930
        %vm1000 = vcmp.eq.f32.partialorder %v835, %v867
        %vm1001 = vcmp.eq.f32.partialorder %v836, %v888
        %vm1002 = vcmp.eq.f32.partialorder %v837, %v909
        %vm1003 = vcmp.eq.f32.partialorder %v838, %v930
        %vm1004 = vcmp.eq.f32.partialorder %v839, %v867
        %vm1005 = vcmp.eq.f32.partialorder %v840, %v888
        %vm1006 = vcmp.eq.f32.partialorder %v841, %v909
        %vm1007 = vcmp.eq.f32.partialorder %v842, %v930
        %vm1008 = vcmp.eq.f32.partialorder %v843, %v867
        %vm1009 = vcmp.eq.f32.partialorder %v844, %v888
        %vm1010 = vcmp.eq.f32.partialorder %v845, %v909
        %vm1011 = vcmp.eq.f32.partialorder %v846, %v930
        %v1012 = vsel %vm948, %v932, 128
        %v1013 = vsel %vm949, %v932, 128
        %v1014 = vsel %vm950, %v932, 128
        %v1015 = vsel %vm951, %v932, 128
        %v1016 = vsel %vm952, %v933, 128
        %v1017 = vsel %vm953, %v933, 128
        %v1018 = vsel %vm954, %v933, 128
        %v1019 = vsel %vm955, %v933, 128
        %v1020 = vsel %vm956, %v934, 128
        %v1021 = vsel %vm957, %v934, 128
        %v1022 = vsel %vm958, %v934, 128
        %v1023 = vsel %vm959, %v934, 128
        %v1024 = vsel %vm960, %v935, 128
        %v1025 = vsel %vm961, %v935, 128
        %v1026 = vsel %vm962, %v935, 128
        %v1027 = vsel %vm963, %v935, 128
        %v1028 = vsel %vm964, %v936, 128
        %v1029 = vsel %vm965, %v936, 128
        %v1030 = vsel %vm966, %v936, 128
        %v1031 = vsel %vm967, %v936, 128
        %v1032 = vsel %vm968, %v937, 128
        %v1033 = vsel %vm969, %v937, 128
        %v1034 = vsel %vm970, %v937, 128
        %v1035 = vsel %vm971, %v937, 128
        %v1036 = vsel %vm972, %v938, 128
        %v1037 = vsel %vm973, %v938, 128
        %v1038 = vsel %vm974, %v938, 128
        %v1039 = vsel %vm975, %v938, 128
        %v1040 = vsel %vm976, %v939, 128
        %v1041 = vsel %vm977, %v939, 128
        %v1042 = vsel %vm978, %v939, 128
        %v1043 = vsel %vm979, %v939, 128
        %v1044 = vsel %vm980, %v940, 128
        %v1045 = vsel %vm981, %v940, 128
        %v1046 = vsel %vm982, %v940, 128
        %v1047 = vsel %vm983, %v940, 128
        %v1048 = vsel %vm984, %v941, 128
        %v1049 = vsel %vm985, %v941, 128
        %v1050 = vsel %vm986, %v941, 128
        %v1051 = vsel %vm987, %v941, 128
        %v1052 = vsel %vm988, %v942, 128
        %v1053 = vsel %vm989, %v942, 128
        %v1054 = vsel %vm990, %v942, 128
        %v1055 = vsel %vm991, %v942, 128
        %v1056 = vsel %vm992, %v943, 128
        %v1057 = vsel %vm993, %v943, 128
        %v1058 = vsel %vm994, %v943, 128
        %v1059 = vsel %vm995, %v943, 128
        %v1060 = vsel %vm996, %v944, 128
        %v1061 = vsel %vm997, %v944, 128
        %v1062 = vsel %vm998, %v944, 128
        %v1063 = vsel %vm999, %v944, 128
        %v1064 = vsel %vm1000, %v945, 128
        %v1065 = vsel %vm1001, %v945, 128
        %v1066 = vsel %vm1002, %v945, 128
        %v1067 = vsel %vm1003, %v945, 128
        %v1068 = vsel %vm1004, %v946, 128
        %v1069 = vsel %vm1005, %v946, 128
        %v1070 = vsel %vm1006, %v946, 128
        %v1071 = vsel %vm1007, %v946, 128
        %v1072 = vsel %vm1008, %v947, 128
        %v1073 = vsel %vm1009, %v947, 128
        %v1074 = vsel %vm1010, %v947, 128
        %v1075 = vsel %vm1011, %v947, 128
        %vm1076 = vcmp.lt.s32.totalorder %v1012, %v1016
        %v1077 = vsel %vm1076, %v1012, %v1016
        %vm1078 = vcmp.lt.s32.totalorder %v1077, %v1020
        %v1079 = vsel %vm1078, %v1077, %v1020
        %vm1080 = vcmp.lt.s32.totalorder %v1079, %v1024
        %v1081 = vsel %vm1080, %v1079, %v1024
        %vm1082 = vcmp.lt.s32.totalorder %v1081, %v1028
        %v1083 = vsel %vm1082, %v1081, %v1028
        %vm1084 = vcmp.lt.s32.totalorder %v1083, %v1032
        %v1085 = vsel %vm1084, %v1083, %v1032
        %vm1086 = vcmp.lt.s32.totalorder %v1085, %v1036
        %v1087 = vsel %vm1086, %v1085, %v1036
        %vm1088 = vcmp.lt.s32.totalorder %v1087, %v1040
        %v1089 = vsel %vm1088, %v1087, %v1040
        %vm1090 = vcmp.lt.s32.totalorder %v1089, %v1044
        %v1091 = vsel %vm1090, %v1089, %v1044
        %vm1092 = vcmp.lt.s32.totalorder %v1091, %v1048
        %v1093 = vsel %vm1092, %v1091, %v1048
        %vm1094 = vcmp.lt.s32.totalorder %v1093, %v1052
        %v1095 = vsel %vm1094, %v1093, %v1052
        %vm1096 = vcmp.lt.s32.totalorder %v1095, %v1056
        %v1097 = vsel %vm1096, %v1095, %v1056
        %vm1098 = vcmp.lt.s32.totalorder %v1097, %v1060
        %v1099 = vsel %vm1098, %v1097, %v1060
        %vm1100 = vcmp.lt.s32.totalorder %v1099, %v1064
        %v1101 = vsel %vm1100, %v1099, %v1064
        %vm1102 = vcmp.lt.s32.totalorder %v1101, %v1068
        %v1103 = vsel %vm1102, %v1101, %v1068
        %vm1104 = vcmp.lt.s32.totalorder %v1103, %v1072
        %v1105 = vsel %vm1104, %v1103, %v1072
        %v1106 = vrot.slane %v1105, 4
        %vm1107 = vcmp.lt.s32.totalorder %v1105, %v1106
        %v1108 = vsel %vm1107, %v1105, %v1106
        %v1109 = vrot.slane %v1108, 2
        %vm1110 = vcmp.lt.s32.totalorder %v1108, %v1109
        %v1111 = vsel %vm1110, %v1108, %v1109
        %v1112 = vrot.slane %v1111, 1
        %vm1113 = vcmp.lt.s32.totalorder %v1111, %v1112
        %v1114 = vsel %vm1113, %v1111, %v1112
        %vm1115 = vcmp.lt.s32.totalorder %v1013, %v1017
        %v1116 = vsel %vm1115, %v1013, %v1017
        %vm1117 = vcmp.lt.s32.totalorder %v1116, %v1021
        %v1118 = vsel %vm1117, %v1116, %v1021
        %vm1119 = vcmp.lt.s32.totalorder %v1118, %v1025
        %v1120 = vsel %vm1119, %v1118, %v1025
        %vm1121 = vcmp.lt.s32.totalorder %v1120, %v1029
        %v1122 = vsel %vm1121, %v1120, %v1029
        %vm1123 = vcmp.lt.s32.totalorder %v1122, %v1033
        %v1124 = vsel %vm1123, %v1122, %v1033
        %vm1125 = vcmp.lt.s32.totalorder %v1124, %v1037
        %v1126 = vsel %vm1125, %v1124, %v1037
        %vm1127 = vcmp.lt.s32.totalorder %v1126, %v1041
        %v1128 = vsel %vm1127, %v1126, %v1041
        %vm1129 = vcmp.lt.s32.totalorder %v1128, %v1045
        %v1130 = vsel %vm1129, %v1128, %v1045
        %vm1131 = vcmp.lt.s32.totalorder %v1130, %v1049
        %v1132 = vsel %vm1131, %v1130, %v1049
        %vm1133 = vcmp.lt.s32.totalorder %v1132, %v1053
        %v1134 = vsel %vm1133, %v1132, %v1053
        %vm1135 = vcmp.lt.s32.totalorder %v1134, %v1057
        %v1136 = vsel %vm1135, %v1134, %v1057
        %vm1137 = vcmp.lt.s32.totalorder %v1136, %v1061
        %v1138 = vsel %vm1137, %v1136, %v1061
        %vm1139 = vcmp.lt.s32.totalorder %v1138, %v1065
        %v1140 = vsel %vm1139, %v1138, %v1065
        %vm1141 = vcmp.lt.s32.totalorder %v1140, %v1069
        %v1142 = vsel %vm1141, %v1140, %v1069
        %vm1143 = vcmp.lt.s32.totalorder %v1142, %v1073
        %v1144 = vsel %vm1143, %v1142, %v1073
        %v1145 = vrot.slane %v1144, 4
        %vm1146 = vcmp.lt.s32.totalorder %v1144, %v1145
        %v1147 = vsel %vm1146, %v1144, %v1145
        %v1148 = vrot.slane %v1147, 2
        %vm1149 = vcmp.lt.s32.totalorder %v1147, %v1148
        %v1150 = vsel %vm1149, %v1147, %v1148
        %v1151 = vrot.slane %v1150, 1
        %vm1152 = vcmp.lt.s32.totalorder %v1150, %v1151
        %v1153 = vsel %vm1152, %v1150, %v1151
        %vm1154 = vcmp.lt.s32.totalorder %v1014, %v1018
        %v1155 = vsel %vm1154, %v1014, %v1018
        %vm1156 = vcmp.lt.s32.totalorder %v1155, %v1022
        %v1157 = vsel %vm1156, %v1155, %v1022
        %vm1158 = vcmp.lt.s32.totalorder %v1157, %v1026
        %v1159 = vsel %vm1158, %v1157, %v1026
        %vm1160 = vcmp.lt.s32.totalorder %v1159, %v1030
        %v1161 = vsel %vm1160, %v1159, %v1030
        %vm1162 = vcmp.lt.s32.totalorder %v1161, %v1034
        %v1163 = vsel %vm1162, %v1161, %v1034
        %vm1164 = vcmp.lt.s32.totalorder %v1163, %v1038
        %v1165 = vsel %vm1164, %v1163, %v1038
        %vm1166 = vcmp.lt.s32.totalorder %v1165, %v1042
        %v1167 = vsel %vm1166, %v1165, %v1042
        %vm1168 = vcmp.lt.s32.totalorder %v1167, %v1046
        %v1169 = vsel %vm1168, %v1167, %v1046
        %vm1170 = vcmp.lt.s32.totalorder %v1169, %v1050
        %v1171 = vsel %vm1170, %v1169, %v1050
        %vm1172 = vcmp.lt.s32.totalorder %v1171, %v1054
        %v1173 = vsel %vm1172, %v1171, %v1054
        %vm1174 = vcmp.lt.s32.totalorder %v1173, %v1058
        %v1175 = vsel %vm1174, %v1173, %v1058
        %vm1176 = vcmp.lt.s32.totalorder %v1175, %v1062
        %v1177 = vsel %vm1176, %v1175, %v1062
        %vm1178 = vcmp.lt.s32.totalorder %v1177, %v1066
        %v1179 = vsel %vm1178, %v1177, %v1066
        %vm1180 = vcmp.lt.s32.totalorder %v1179, %v1070
        %v1181 = vsel %vm1180, %v1179, %v1070
        %vm1182 = vcmp.lt.s32.totalorder %v1181, %v1074
        %v1183 = vsel %vm1182, %v1181, %v1074
        %v1184 = vrot.slane %v1183, 4
        %vm1185 = vcmp.lt.s32.totalorder %v1183, %v1184
        %v1186 = vsel %vm1185, %v1183, %v1184
        %v1187 = vrot.slane %v1186, 2
        %vm1188 = vcmp.lt.s32.totalorder %v1186, %v1187
        %v1189 = vsel %vm1188, %v1186, %v1187
        %v1190 = vrot.slane %v1189, 1
        %vm1191 = vcmp.lt.s32.totalorder %v1189, %v1190
        %v1192 = vsel %vm1191, %v1189, %v1190
        %vm1193 = vcmp.lt.s32.totalorder %v1015, %v1019
        %v1194 = vsel %vm1193, %v1015, %v1019
        %vm1195 = vcmp.lt.s32.totalorder %v1194, %v1023
        %v1196 = vsel %vm1195, %v1194, %v1023
        %vm1197 = vcmp.lt.s32.totalorder %v1196, %v1027
        %v1198 = vsel %vm1197, %v1196, %v1027
        %vm1199 = vcmp.lt.s32.totalorder %v1198, %v1031
        %v1200 = vsel %vm1199, %v1198, %v1031
        %vm1201 = vcmp.lt.s32.totalorder %v1200, %v1035
        %v1202 = vsel %vm1201, %v1200, %v1035
        %vm1203 = vcmp.lt.s32.totalorder %v1202, %v1039
        %v1204 = vsel %vm1203, %v1202, %v1039
        %vm1205 = vcmp.lt.s32.totalorder %v1204, %v1043
        %v1206 = vsel %vm1205, %v1204, %v1043
        %vm1207 = vcmp.lt.s32.totalorder %v1206, %v1047
        %v1208 = vsel %vm1207, %v1206, %v1047
        %vm1209 = vcmp.lt.s32.totalorder %v1208, %v1051
        %v1210 = vsel %vm1209, %v1208, %v1051
        %vm1211 = vcmp.lt.s32.totalorder %v1210, %v1055
        %v1212 = vsel %vm1211, %v1210, %v1055
        %vm1213 = vcmp.lt.s32.totalorder %v1212, %v1059
        %v1214 = vsel %vm1213, %v1212, %v1059
        %vm1215 = vcmp.lt.s32.totalorder %v1214, %v1063
        %v1216 = vsel %vm1215, %v1214, %v1063
        %vm1217 = vcmp.lt.s32.totalorder %v1216, %v1067
        %v1218 = vsel %vm1217, %v1216, %v1067
        %vm1219 = vcmp.lt.s32.totalorder %v1218, %v1071
        %v1220 = vsel %vm1219, %v1218, %v1071
        %vm1221 = vcmp.lt.s32.totalorder %v1220, %v1075
        %v1222 = vsel %vm1221, %v1220, %v1075
        %v1223 = vrot.slane %v1222, 4
        %vm1224 = vcmp.lt.s32.totalorder %v1222, %v1223
        %v1225 = vsel %vm1224, %v1222, %v1223
        %v1226 = vrot.slane %v1225, 2
        %vm1227 = vcmp.lt.s32.totalorder %v1225, %v1226
        %v1228 = vsel %vm1227, %v1225, %v1226
        %v1229 = vrot.slane %v1228, 1
        %vm1230 = vcmp.lt.s32.totalorder %v1228, %v1229
        %v1231 = vsel %vm1230, %v1228, %v1229
        %vm1232 = vcmp.eq.s32.totalorder %v932, %v1114
        %vm1233 = vcmp.eq.s32.totalorder %v932, %v1153
        %vm1234 = vcmp.eq.s32.totalorder %v932, %v1192
        %vm1235 = vcmp.eq.s32.totalorder %v932, %v1231
        %vm1236 = vcmp.eq.s32.totalorder %v933, %v1114
        %vm1237 = vcmp.eq.s32.totalorder %v933, %v1153
        %vm1238 = vcmp.eq.s32.totalorder %v933, %v1192
        %vm1239 = vcmp.eq.s32.totalorder %v933, %v1231
        %vm1240 = vcmp.eq.s32.totalorder %v934, %v1114
        %vm1241 = vcmp.eq.s32.totalorder %v934, %v1153
        %vm1242 = vcmp.eq.s32.totalorder %v934, %v1192
        %vm1243 = vcmp.eq.s32.totalorder %v934, %v1231
        %vm1244 = vcmp.eq.s32.totalorder %v935, %v1114
        %vm1245 = vcmp.eq.s32.totalorder %v935, %v1153
        %vm1246 = vcmp.eq.s32.totalorder %v935, %v1192
        %vm1247 = vcmp.eq.s32.totalorder %v935, %v1231
        %vm1248 = vcmp.eq.s32.totalorder %v936, %v1114
        %vm1249 = vcmp.eq.s32.totalorder %v936, %v1153
        %vm1250 = vcmp.eq.s32.totalorder %v936, %v1192
        %vm1251 = vcmp.eq.s32.totalorder %v936, %v1231
        %vm1252 = vcmp.eq.s32.totalorder %v937, %v1114
        %vm1253 = vcmp.eq.s32.totalorder %v937, %v1153
        %vm1254 = vcmp.eq.s32.totalorder %v937, %v1192
        %vm1255 = vcmp.eq.s32.totalorder %v937, %v1231
        %vm1256 = vcmp.eq.s32.totalorder %v938, %v1114
        %vm1257 = vcmp.eq.s32.totalorder %v938, %v1153
        %vm1258 = vcmp.eq.s32.totalorder %v938, %v1192
        %vm1259 = vcmp.eq.s32.totalorder %v938, %v1231
        %vm1260 = vcmp.eq.s32.totalorder %v939, %v1114
        %vm1261 = vcmp.eq.s32.totalorder %v939, %v1153
        %vm1262 = vcmp.eq.s32.totalorder %v939, %v1192
        %vm1263 = vcmp.eq.s32.totalorder %v939, %v1231
        %vm1264 = vcmp.eq.s32.totalorder %v940, %v1114
        %vm1265 = vcmp.eq.s32.totalorder %v940, %v1153
        %vm1266 = vcmp.eq.s32.totalorder %v940, %v1192
        %vm1267 = vcmp.eq.s32.totalorder %v940, %v1231
        %vm1268 = vcmp.eq.s32.totalorder %v941, %v1114
        %vm1269 = vcmp.eq.s32.totalorder %v941, %v1153
        %vm1270 = vcmp.eq.s32.totalorder %v941, %v1192
        %vm1271 = vcmp.eq.s32.totalorder %v941, %v1231
        %vm1272 = vcmp.eq.s32.totalorder %v942, %v1114
        %vm1273 = vcmp.eq.s32.totalorder %v942, %v1153
        %vm1274 = vcmp.eq.s32.totalorder %v942, %v1192
        %vm1275 = vcmp.eq.s32.totalorder %v942, %v1231
        %vm1276 = vcmp.eq.s32.totalorder %v943, %v1114
        %vm1277 = vcmp.eq.s32.totalorder %v943, %v1153
        %vm1278 = vcmp.eq.s32.totalorder %v943, %v1192
        %vm1279 = vcmp.eq.s32.totalorder %v943, %v1231
        %vm1280 = vcmp.eq.s32.totalorder %v944, %v1114
        %vm1281 = vcmp.eq.s32.totalorder %v944, %v1153
        %vm1282 = vcmp.eq.s32.totalorder %v944, %v1192
        %vm1283 = vcmp.eq.s32.totalorder %v944, %v1231
        %vm1284 = vcmp.eq.s32.totalorder %v945, %v1114
        %vm1285 = vcmp.eq.s32.totalorder %v945, %v1153
        %vm1286 = vcmp.eq.s32.totalorder %v945, %v1192
        %vm1287 = vcmp.eq.s32.totalorder %v945, %v1231
        %vm1288 = vcmp.eq.s32.totalorder %v946, %v1114
        %vm1289 = vcmp.eq.s32.totalorder %v946, %v1153
        %vm1290 = vcmp.eq.s32.totalorder %v946, %v1192
        %vm1291 = vcmp.eq.s32.totalorder %v946, %v1231
        %vm1292 = vcmp.eq.s32.totalorder %v947, %v1114
        %vm1293 = vcmp.eq.s32.totalorder %v947, %v1153
        %vm1294 = vcmp.eq.s32.totalorder %v947, %v1192
        %vm1295 = vcmp.eq.s32.totalorder %v947, %v1231
        %v1296 = vsel %vm1232, 1, 0
        %v1297 = vsel %vm1233, 1, 0
        %v1298 = vsel %vm1234, 1, 0
        %v1299 = vsel %vm1235, 1, 0
        %v1300 = vsel %vm1236, 1, 0
        %v1301 = vsel %vm1237, 1, 0
        %v1302 = vsel %vm1238, 1, 0
        %v1303 = vsel %vm1239, 1, 0
        %v1304 = vsel %vm1240, 1, 0
        %v1305 = vsel %vm1241, 1, 0
        %v1306 = vsel %vm1242, 1, 0
        %v1307 = vsel %vm1243, 1, 0
        %v1308 = vsel %vm1244, 1, 0
        %v1309 = vsel %vm1245, 1, 0
        %v1310 = vsel %vm1246, 1, 0
        %v1311 = vsel %vm1247, 1, 0
        %v1312 = vsel %vm1248, 1, 0
        %v1313 = vsel %vm1249, 1, 0
        %v1314 = vsel %vm1250, 1, 0
        %v1315 = vsel %vm1251, 1, 0
        %v1316 = vsel %vm1252, 1, 0
        %v1317 = vsel %vm1253, 1, 0
        %v1318 = vsel %vm1254, 1, 0
        %v1319 = vsel %vm1255, 1, 0
        %v1320 = vsel %vm1256, 1, 0
        %v1321 = vsel %vm1257, 1, 0
        %v1322 = vsel %vm1258, 1, 0
        %v1323 = vsel %vm1259, 1, 0
        %v1324 = vsel %vm1260, 1, 0
        %v1325 = vsel %vm1261, 1, 0
        %v1326 = vsel %vm1262, 1, 0
        %v1327 = vsel %vm1263, 1, 0
        %v1328 = vsel %vm1264, 1, 0
        %v1329 = vsel %vm1265, 1, 0
        %v1330 = vsel %vm1266, 1, 0
        %v1331 = vsel %vm1267, 1, 0
        %v1332 = vsel %vm1268, 1, 0
        %v1333 = vsel %vm1269, 1, 0
        %v1334 = vsel %vm1270, 1, 0
        %v1335 = vsel %vm1271, 1, 0
        %v1336 = vsel %vm1272, 1, 0
        %v1337 = vsel %vm1273, 1, 0
        %v1338 = vsel %vm1274, 1, 0
        %v1339 = vsel %vm1275, 1, 0
        %v1340 = vsel %vm1276, 1, 0
        %v1341 = vsel %vm1277, 1, 0
        %v1342 = vsel %vm1278, 1, 0
        %v1343 = vsel %vm1279, 1, 0
        %v1344 = vsel %vm1280, 1, 0
        %v1345 = vsel %vm1281, 1, 0
        %v1346 = vsel %vm1282, 1, 0
        %v1347 = vsel %vm1283, 1, 0
        %v1348 = vsel %vm1284, 1, 0
        %v1349 = vsel %vm1285, 1, 0
        %v1350 = vsel %vm1286, 1, 0
        %v1351 = vsel %vm1287, 1, 0
        %v1352 = vsel %vm1288, 1, 0
        %v1353 = vsel %vm1289, 1, 0
        %v1354 = vsel %vm1290, 1, 0
        %v1355 = vsel %vm1291, 1, 0
        %v1356 = vsel %vm1292, 1, 0
        %v1357 = vsel %vm1293, 1, 0
        %v1358 = vsel %vm1294, 1, 0
        %v1359 = vsel %vm1295, 1, 0
        %v1360 = vcvt.s32.f32 %v1296
        %v1361 = vcvt.s32.f32 %v1297
        %v1362 = vcvt.s32.f32 %v1298
        %v1363 = vcvt.s32.f32 %v1299
        %v1364 = vcvt.s32.f32 %v1300
        %v1365 = vcvt.s32.f32 %v1301
        %v1366 = vcvt.s32.f32 %v1302
        %v1367 = vcvt.s32.f32 %v1303
        %v1368 = vcvt.s32.f32 %v1304
        %v1369 = vcvt.s32.f32 %v1305
        %v1370 = vcvt.s32.f32 %v1306
        %v1371 = vcvt.s32.f32 %v1307
        %v1372 = vcvt.s32.f32 %v1308
        %v1373 = vcvt.s32.f32 %v1309
        %v1374 = vcvt.s32.f32 %v1310
        %v1375 = vcvt.s32.f32 %v1311
        %v1376 = vcvt.s32.f32 %v1312
        %v1377 = vcvt.s32.f32 %v1313
        %v1378 = vcvt.s32.f32 %v1314
        %v1379 = vcvt.s32.f32 %v1315
        %v1380 = vcvt.s32.f32 %v1316
        %v1381 = vcvt.s32.f32 %v1317
        %v1382 = vcvt.s32.f32 %v1318
        %v1383 = vcvt.s32.f32 %v1319
        %v1384 = vcvt.s32.f32 %v1320
        %v1385 = vcvt.s32.f32 %v1321
        %v1386 = vcvt.s32.f32 %v1322
        %v1387 = vcvt.s32.f32 %v1323
        %v1388 = vcvt.s32.f32 %v1324
        %v1389 = vcvt.s32.f32 %v1325
        %v1390 = vcvt.s32.f32 %v1326
        %v1391 = vcvt.s32.f32 %v1327
        %v1392 = vcvt.s32.f32 %v1328
        %v1393 = vcvt.s32.f32 %v1329
        %v1394 = vcvt.s32.f32 %v1330
        %v1395 = vcvt.s32.f32 %v1331
        %v1396 = vcvt.s32.f32 %v1332
        %v1397 = vcvt.s32.f32 %v1333
        %v1398 = vcvt.s32.f32 %v1334
        %v1399 = vcvt.s32.f32 %v1335
        %v1400 = vcvt.s32.f32 %v1336
        %v1401 = vcvt.s32.f32 %v1337
        %v1402 = vcvt.s32.f32 %v1338
        %v1403 = vcvt.s32.f32 %v1339
        %v1404 = vcvt.s32.f32 %v1340
        %v1405 = vcvt.s32.f32 %v1341
        %v1406 = vcvt.s32.f32 %v1342
        %v1407 = vcvt.s32.f32 %v1343
        %v1408 = vcvt.s32.f32 %v1344
        %v1409 = vcvt.s32.f32 %v1345
        %v1410 = vcvt.s32.f32 %v1346
        %v1411 = vcvt.s32.f32 %v1347
        %v1412 = vcvt.s32.f32 %v1348
        %v1413 = vcvt.s32.f32 %v1349
        %v1414 = vcvt.s32.f32 %v1350
        %v1415 = vcvt.s32.f32 %v1351
        %v1416 = vcvt.s32.f32 %v1352
        %v1417 = vcvt.s32.f32 %v1353
        %v1418 = vcvt.s32.f32 %v1354
        %v1419 = vcvt.s32.f32 %v1355
        %v1420 = vcvt.s32.f32 %v1356
        %v1421 = vcvt.s32.f32 %v1357
        %v1422 = vcvt.s32.f32 %v1358
        %v1423 = vcvt.s32.f32 %v1359
        %1424 = vmatpush.msra.mxu0 %v1420
        %1425 = vmatpush.msra.mxu0 %v1416
        %1426 = vmatpush.msra.mxu0 %v1412
        %1427 = vmatpush.msra.mxu0 %v1408
        %1428 = vmatpush.msra.mxu0 %v1404
        %1429 = vmatpush.msra.mxu0 %v1400
        %1430 = vmatpush.msra.mxu0 %v1396
        %1431 = vmatpush.msra.mxu0 %v1392
        %1432 = vmatpush.msra.mxu0 %v1388
        %1433 = vmatpush.msra.mxu0 %v1384
        %1434 = vmatpush.msra.mxu0 %v1380
        %1435 = vmatpush.msra.mxu0 %v1376
        %1436 = vmatpush.msra.mxu0 %v1372
        %1437 = vmatpush.msra.mxu0 %v1368
        %1438 = vmatpush.msra.mxu0 %v1364
        %1439 = vmatpush.msra.mxu0 %v1360
        %1440 = vmatmul.f32.gmra.mxu0 %v310
        %v1441 = vpop.f32.mrf.mxu0
        %v1442 = vadd.f32 0.0, %v1441
        %1443 = vmatmul.f32.gmra.mxu0 %v311
        %v1444 = vpop.f32.mrf.mxu0
        %v1445 = vadd.f32 0.0, %v1444
        %1446 = vmatmul.f32.gmra.mxu0 %v312
        %v1447 = vpop.f32.mrf.mxu0
        %v1448 = vadd.f32 0.0, %v1447
        %1449 = vmatmul.f32.gmra.mxu0 %v313
        %v1450 = vpop.f32.mrf.mxu0
        %v1451 = vadd.f32 0.0, %v1450
        %1452 = vdwg.mxu0
        %1453 = vmatpush.msra.mxu0 %v1421
        %1454 = vmatpush.msra.mxu0 %v1417
        %1455 = vmatpush.msra.mxu0 %v1413
        %1456 = vmatpush.msra.mxu0 %v1409
        %1457 = vmatpush.msra.mxu0 %v1405
        %1458 = vmatpush.msra.mxu0 %v1401
        %1459 = vmatpush.msra.mxu0 %v1397
        %1460 = vmatpush.msra.mxu0 %v1393
        %1461 = vmatpush.msra.mxu0 %v1389
        %1462 = vmatpush.msra.mxu0 %v1385
        %1463 = vmatpush.msra.mxu0 %v1381
        %1464 = vmatpush.msra.mxu0 %v1377
        %1465 = vmatpush.msra.mxu0 %v1373
        %1466 = vmatpush.msra.mxu0 %v1369
        %1467 = vmatpush.msra.mxu0 %v1365
        %1468 = vmatpush.msra.mxu0 %v1361
        %1469 = vmatmul.f32.gmra.mxu0 %v310
        %v1470 = vpop.f32.mrf.mxu0
        %v1471 = vadd.f32 0.0, %v1470
        %1472 = vmatmul.f32.gmra.mxu0 %v311
        %v1473 = vpop.f32.mrf.mxu0
        %v1474 = vadd.f32 0.0, %v1473
        %1475 = vmatmul.f32.gmra.mxu0 %v312
        %v1476 = vpop.f32.mrf.mxu0
        %v1477 = vadd.f32 0.0, %v1476
        %1478 = vmatmul.f32.gmra.mxu0 %v313
        %v1479 = vpop.f32.mrf.mxu0
        %v1480 = vadd.f32 0.0, %v1479
        %1481 = vdwg.mxu0
        %1482 = vmatpush.msra.mxu0 %v1422
        %1483 = vmatpush.msra.mxu0 %v1418
        %1484 = vmatpush.msra.mxu0 %v1414
        %1485 = vmatpush.msra.mxu0 %v1410
        %1486 = vmatpush.msra.mxu0 %v1406
        %1487 = vmatpush.msra.mxu0 %v1402
        %1488 = vmatpush.msra.mxu0 %v1398
        %1489 = vmatpush.msra.mxu0 %v1394
        %1490 = vmatpush.msra.mxu0 %v1390
        %1491 = vmatpush.msra.mxu0 %v1386
        %1492 = vmatpush.msra.mxu0 %v1382
        %1493 = vmatpush.msra.mxu0 %v1378
        %1494 = vmatpush.msra.mxu0 %v1374
        %1495 = vmatpush.msra.mxu0 %v1370
        %1496 = vmatpush.msra.mxu0 %v1366
        %1497 = vmatpush.msra.mxu0 %v1362
        %1498 = vmatmul.f32.gmra.mxu0 %v310
        %v1499 = vpop.f32.mrf.mxu0
        %v1500 = vadd.f32 0.0, %v1499
        %1501 = vmatmul.f32.gmra.mxu0 %v311
        %v1502 = vpop.f32.mrf.mxu0
        %v1503 = vadd.f32 0.0, %v1502
        %1504 = vmatmul.f32.gmra.mxu0 %v312
        %v1505 = vpop.f32.mrf.mxu0
        %v1506 = vadd.f32 0.0, %v1505
        %1507 = vmatmul.f32.gmra.mxu0 %v313
        %v1508 = vpop.f32.mrf.mxu0
        %v1509 = vadd.f32 0.0, %v1508
        %1510 = vdwg.mxu0
        %1511 = vmatpush.msra.mxu0 %v1423
        %1512 = vmatpush.msra.mxu0 %v1419
        %1513 = vmatpush.msra.mxu0 %v1415
        %1514 = vmatpush.msra.mxu0 %v1411
        %1515 = vmatpush.msra.mxu0 %v1407
        %1516 = vmatpush.msra.mxu0 %v1403
        %1517 = vmatpush.msra.mxu0 %v1399
        %1518 = vmatpush.msra.mxu0 %v1395
        %1519 = vmatpush.msra.mxu0 %v1391
        %1520 = vmatpush.msra.mxu0 %v1387
        %1521 = vmatpush.msra.mxu0 %v1383
        %1522 = vmatpush.msra.mxu0 %v1379
        %1523 = vmatpush.msra.mxu0 %v1375
        %1524 = vmatpush.msra.mxu0 %v1371
        %1525 = vmatpush.msra.mxu0 %v1367
        %1526 = vmatpush.msra.mxu0 %v1363
        %1527 = vmatmul.f32.gmra.mxu0 %v310
        %v1528 = vpop.f32.mrf.mxu0
        %v1529 = vadd.f32 0.0, %v1528
        %1530 = vmatmul.f32.gmra.mxu0 %v311
        %v1531 = vpop.f32.mrf.mxu0
        %v1532 = vadd.f32 0.0, %v1531
        %1533 = vmatmul.f32.gmra.mxu0 %v312
        %v1534 = vpop.f32.mrf.mxu0
        %v1535 = vadd.f32 0.0, %v1534
        %1536 = vmatmul.f32.gmra.mxu0 %v313
        %v1537 = vpop.f32.mrf.mxu0
        %v1538 = vadd.f32 0.0, %v1537
        %1539 = vdwg.mxu0
        %1540 = vst [vmem:[%s268] sm:$0xff] %v1442
        %1541 = vst [vmem:[%s268 + $0x8] sm:$0xff] %v1471
        %1542 = vst [vmem:[%s268 + $0x10] sm:$0xff] %v1500
        %1543 = vst [vmem:[%s268 + $0x18] sm:$0xff] %v1529
        %1544 = vst [vmem:[%s268 + $0x20] sm:$0xff] %v1445
        %1545 = vst [vmem:[%s268 + $0x28] sm:$0xff] %v1474
        %1546 = vst [vmem:[%s268 + $0x30] sm:$0xff] %v1503
        %1547 = vst [vmem:[%s268 + $0x38] sm:$0xff] %v1532
        %1548 = vst [vmem:[%s268 + $0x40] sm:$0xff] %v1448
        %1549 = vst [vmem:[%s268 + $0x48] sm:$0xff] %v1477
        %1550 = vst [vmem:[%s268 + $0x50] sm:$0xff] %v1506
        %1551 = vst [vmem:[%s268 + $0x58] sm:$0xff] %v1535
        %1552 = vst [vmem:[%s268 + $0x60] sm:$0xff] %v1451
        %1553 = vst [vmem:[%s268 + $0x68] sm:$0xff] %v1480
        %1554 = vst [vmem:[%s268 + $0x70] sm:$0xff] %v1509
        %1555 = vst [vmem:[%s268 + $0x78] sm:$0xff] %v1538
        %v1556 = vsub.f32 %v1442, %v278
        %v1557 = vsub.f32 %v1471, %v279
        %v1558 = vsub.f32 %v1500, %v280
        %v1559 = vsub.f32 %v1529, %v281
        %v1560 = vsub.f32 %v1445, %v282
        %v1561 = vsub.f32 %v1474, %v283
        %v1562 = vsub.f32 %v1503, %v284
        %v1563 = vsub.f32 %v1532, %v285
        %v1564 = vsub.f32 %v1448, %v286
        %v1565 = vsub.f32 %v1477, %v287
        %v1566 = vsub.f32 %v1506, %v288
        %v1567 = vsub.f32 %v1535, %v289
        %v1568 = vsub.f32 %v1451, %v290
        %v1569 = vsub.f32 %v1480, %v291
        %v1570 = vsub.f32 %v1509, %v292
        %v1571 = vsub.f32 %v1538, %v293
        %v1572 = vmul.f32 %v1556, %v1556
        %v1573 = vmul.f32 %v1557, %v1557
        %v1574 = vmul.f32 %v1558, %v1558
        %v1575 = vmul.f32 %v1559, %v1559
        %v1576 = vmul.f32 %v1560, %v1560
        %v1577 = vmul.f32 %v1561, %v1561
        %v1578 = vmul.f32 %v1562, %v1562
        %v1579 = vmul.f32 %v1563, %v1563
        %v1580 = vmul.f32 %v1564, %v1564
        %v1581 = vmul.f32 %v1565, %v1565
        %v1582 = vmul.f32 %v1566, %v1566
        %v1583 = vmul.f32 %v1567, %v1567
        %v1584 = vmul.f32 %v1568, %v1568
        %v1585 = vmul.f32 %v1569, %v1569
        %v1586 = vmul.f32 %v1570, %v1570
        %v1587 = vmul.f32 %v1571, %v1571
        %v1588 = vadd.f32 %v1572, %v1573
        %v1589 = vadd.f32 %v1588, %v1574
        %v1590 = vadd.f32 %v1589, %v1575
        %v1591 = vadd.f32 %v1590, %v1576
        %v1592 = vadd.f32 %v1591, %v1577
        %v1593 = vadd.f32 %v1592, %v1578
        %v1594 = vadd.f32 %v1593, %v1579
        %v1595 = vadd.f32 %v1594, %v1580
        %v1596 = vadd.f32 %v1595, %v1581
        %v1597 = vadd.f32 %v1596, %v1582
        %v1598 = vadd.f32 %v1597, %v1583
        %v1599 = vadd.f32 %v1598, %v1584
        %v1600 = vadd.f32 %v1599, %v1585
        %v1601 = vadd.f32 %v1600, %v1586
        %v1602 = vadd.f32 %v1601, %v1587
        %1603 = vadd.xlane.f32.xlu0 %v1602
        %v1604 = vpop.xlane.xlu0 %1603
        %v1605 = vrot.slane %v1604, 4
        %v1606 = vadd.f32 %v1604, %v1605
        %v1607 = vrot.slane %v1606, 2
        %v1608 = vadd.f32 %v1606, %v1607
        %v1609 = vrot.slane %v1608, 1
        %v1610 = vadd.f32 %v1608, %v1609
        %s1611 = vtos %v1610
        %v1612 = vstv %s1611
        %1613 = vst [vmem:[%s275] sm:$0xff] %v1612
        %s1614 = sand.u32 %s139, 1
        %s1615 = scalar_lea.sflag [#allocation4], %s1614
        %s1616 = sand.u32 %s139, 1
        %s1617 = smul.addr %s1616, 128
        %s1618 = scalar_lea.vmem [#allocation5], %s1617
        %s1619 = sand.u32 %s167, 1
        %s1620 = scalar_lea.sflag [#allocation7], %s1619
        %s1621 = sand.u32 %s167, 1
        %s1622 = smul.addr %s1621, 8
        %s1623 = scalar_lea.vmem [#allocation6], %s1622
        // Predicated region
        $region41: #{tpu_custom_call.1} parent=35 // pred_check
          %p1624 = pneg %p149
        $region42: #{tpu_custom_call.1} parent=35 // pred_check_branch
          %1626 = sbr.rel (%p1624) target = $region44
        $region43: #{tpu_custom_call.1} parent=35 // pred_region
          %s1627 = smul.u32 4, %s31
          %1629 = vsyncadd %s1615, 0
          %s1630 = smul.addr %s30, 32
          %s1631 = sadd.s32 %s1627, %s1630
          %s1632 = smul.addr %s1631, 8
          %s1633 = scalar_lea.hbm %s4, %s1632
          %s1634 = sshll.u32 %s1618, 4
          %s1635 = int_to_ptr.vmem [resolvable:$true] %s1634
          %s1636 = sshll.u32 %s1633, 4
          %s1637 = int_to_ptr.hbm [resolvable:$true] %s1636
          %1642 = dma.vmem_to_hbm [thread:$0]  %s1635, 2048, %s1637, %s1615, 512, 1024, 32
        $region44: #{tpu_custom_call.1} parent=35 // pred_fallthru
          _
        // Predicated region
        $region45: #{tpu_custom_call.1} parent=35 // pred_check
          %p1643 = pneg %p177
        $region46: #{tpu_custom_call.1} parent=35 // pred_check_branch
          %1645 = sbr.rel (%p1643) target = $region48
        $region47: #{tpu_custom_call.1} parent=35 // pred_region
          %1647 = vsyncadd %s1620, 0
          %s1648 = smul.addr %s30, 2
          %s1649 = sadd.s32 %s31, %s1648
          %s1650 = smul.addr %s1649, 8
          %s1651 = scalar_lea.hbm %s5, %s1650
          %s1653 = sshll.u32 %s1623, 4
          %s1654 = int_to_ptr.vmem [resolvable:$true] %s1653
          %s1655 = sshll.u32 %s1651, 4
          %s1656 = int_to_ptr.hbm [resolvable:$true] %s1655
          %1658 = dma.vmem_to_hbm [thread:$0]  %s1654, 128, %s1656, %s1620
        $region48: #{tpu_custom_call.1} parent=35 // pred_fallthru
          _
      $region36: #{tpu_custom_call.1} parent=5 // pred_fallthru
        _
      %p1659 = scmp.le.s32.totalorder 2, %s21
      // Predicated region
      $region49: #{tpu_custom_call.1} parent=5 // pred_check
        %p1660 = pneg %p1659
      $region50: #{tpu_custom_call.1} parent=5 // pred_check_branch
        %1662 = sbr.rel (%p1660) target = $region52
      $region51: #{tpu_custom_call.1} parent=5 // pred_region
        %s1663 = ssub.s32 %s21, 2
        // Predicated region
        $region53: #{tpu_custom_call.1} parent=51 // pred_check
          %p1664 = pneg %p155
        $region54: #{tpu_custom_call.1} parent=51 // pred_check_branch
          %1666 = sbr.rel (%p1664) target = $region56
        $region55: #{tpu_custom_call.1} parent=51 // pred_region
          %s1667 = sand.u32 %s140, 1
          %s1668 = scalar_lea.sflag [#allocation4], %s1667
          %s1669 = sand.u32 %s140, 1
          %s1670 = smul.addr %s1669, 128
          %s1671 = scalar_lea.vmem [#allocation5], %s1670
          %1673 = dma.done %s1668, 2048
        $region56: #{tpu_custom_call.1} parent=51 // pred_fallthru
          _
        // Predicated region
        $region57: #{tpu_custom_call.1} parent=51 // pred_check
          %p1674 = pneg %p183
        $region58: #{tpu_custom_call.1} parent=51 // pred_check_branch
          %1676 = sbr.rel (%p1674) target = $region60
        $region59: #{tpu_custom_call.1} parent=51 // pred_region
          %s1677 = sand.u32 %s168, 1
          %s1678 = scalar_lea.sflag [#allocation7], %s1677
          %s1679 = sand.u32 %s168, 1
          %s1680 = smul.addr %s1679, 8
          %s1681 = scalar_lea.vmem [#allocation6], %s1680
          %1683 = dma.done %s1678, 128
        $region60: #{tpu_custom_call.1} parent=51 // pred_fallthru
          _
      $region52: #{tpu_custom_call.1} parent=5 // pred_fallthru
        _
    $region6: #{tpu_custom_call.1} parent=1 // loop_footer
      %s25 = sadd.s32 1, %s21
    $region7: #{tpu_custom_call.1} parent=1 // loop_footer_branch
      %20 = sbr.rel target = $region3
    $region8: #{tpu_custom_call.1} parent=1 // loop_exit
      _
    %1684 = vsyncpa [#allocation3], 1
    %s1685 = scalar_lea.sflag [#allocation3], 1
    %1686 = vsyncpa %s1685, 1
    %1687 = vsyncpa [#allocation4], 1
    %s1688 = scalar_lea.sflag [#allocation4], 1
    %1689 = vsyncpa %s1688, 1
    %1690 = vsyncpa [#allocation7], 1
    %s1691 = scalar_lea.sflag [#allocation7], 1
    %1692 = vsyncpa %s1691, 1

</llo_original>
